<compile_context>
chip_gen: v7x
topology: tpu7x:2x2x1
jax: 0.10.0
libtpu: 0.0.40
codegen_flags: <defaults>
</compile_context>

<pallas_src>
from functools import partial

import jax
import jax.numpy as jnp
from jax import lax
from jax.experimental import pallas as pl
from jax.experimental.pallas import tpu as pltpu


# ---------------------------------------------------------------------------
# VMEM budget / tiling helpers
# ---------------------------------------------------------------------------
def _round_up(x, m):
    return (x + m - 1) // m * m


def _vmem_limit_bytes():
    """Scoped-VMEM request gated on the physical VMEM of the running chip."""
    cap = None
    try:
        info = pltpu.get_tpu_info()
        cap = getattr(info, "vmem_capacity_bytes", None)
    except Exception:
        cap = None
    if cap is None:
        cap = 64 * 1024 * 1024            # conservative default (v7x-safe)
    # never request more than ~3/4 of physical; 96 MiB on 128-MiB parts, 48 MiB on v7x
    return int(min(96 * 1024 * 1024, cap * 3 // 4))


def _choose_sd_tile(sd, per_lane_bytes, budget_bytes, max_tile):
    """Pick a spatial tile: full extent if it fits, else the largest 128-multiple
    under both `max_tile` and the VMEM budget; pad sd up so the grid divides."""
    cap = (budget_bytes // max(per_lane_bytes, 1)) // 128 * 128
    cap = max(128, min(max_tile, cap))
    if sd <= cap:
        return sd, sd                      # single full block (no padding needed)
    t = cap
    return t, _round_up(sd, t)


# ---------------------------------------------------------------------------
# Pallas kernels
# ---------------------------------------------------------------------------
def _down_gemm_relu_kernel(a_ref, w_ref, b_ref, o_ref, acc_ref):
    """o[n, :, s_tile] = relu(W @ A[n, :, s_tile] + b), K-tiled f32 accumulation.
    The ReLU is the *up-path* ReLU fused into the GEMM epilogue (applied once
    per output element, not on the 64x-replicated im2col operand)."""
    k = pl.program_id(2)

    @pl.when(k == 0)
    def _():
        acc_ref[...] = jnp.zeros_like(acc_ref)

    a = a_ref[0]                                    # (kt, sd_t)  bf16, K-major
    w = w_ref[...]                                  # (Co, kt)    bf16
    acc_ref[...] += lax.dot_general(w, a, (((1,), (0,)), ((), ())),
                                    preferred_element_type=jnp.float32)

    @pl.when(k == pl.num_programs(2) - 1)
    def _():
        y = acc_ref[...] + b_ref[...]               # bias (Co, 1) broadcast on lanes
        o_ref[0] = jnp.maximum(y, 0.0).astype(o_ref.dtype)


def _up_gemm_stats_kernel(a_ref, w_ref, y_ref, s1_ref, s2_ref):
    """Pass 1 of the up path: 8 parity GEMMs (no bias - InstanceNorm cancels it)
    + per-tile f32 sum / sum-of-squares partials for the InstanceNorm stats."""
    P, Cout, _ = w_ref.shape
    s1 = jnp.zeros((Cout, 1), jnp.float32)
    s2 = jnp.zeros((Cout, 1), jnp.float32)
    for p in range(P):                              # static unroll over 8 parities
        yp = lax.dot_general(w_ref[p], a_ref[0, p], (((1,), (0,)), ((), ())),
                             preferred_element_type=jnp.float32)   # (Cout, sd_t)
        y_ref[0, p] = yp.astype(y_ref.dtype)
        s1 = s1 + jnp.sum(yp, axis=1, keepdims=True)
        s2 = s2 + jnp.sum(yp * yp, axis=1, keepdims=True)
    s1_ref[0, 0] = s1
    s2_ref[0, 0] = s2


def _up_norm_kernel(y_ref, mean_ref, rstd_ref, o_ref):
    """Pass 2 of the up path: normalize with the per-(n, c) mean/rstd."""
    m = mean_ref[0]                                 # (Cout, 1)
    r = rstd_ref[0]                                 # (Cout, 1)
    P = y_ref.shape[1]
    for p in range(P):
        yp = y_ref[0, p].astype(jnp.float32)
        o_ref[0, p] = ((yp - m) * r).astype(o_ref.dtype)


# ---------------------------------------------------------------------------
# Pallas wrappers
# ---------------------------------------------------------------------------
def conv_down_relu(a_cols, w_mat, bias, *, out_dtype=jnp.bfloat16):
    """a_cols: (N, K, sd) K-major im2col columns, w_mat: (Co, K), bias: (Co,).
    Returns relu(conv + b) as (N, Co, sd) with the spatial axis on lanes."""
    N, K, sd = a_cols.shape
    Co = w_mat.shape[0]
    vmem = _vmem_limit_bytes()

    # K tiling (keeps double-buffered A blocks bounded at large channel counts)
    kt_max = 2048
    if K <= kt_max:
        kt, K_pad = K, K
    else:
        kt, K_pad = kt_max, _round_up(K, kt_max)

    # sd tiling: per-lane VMEM ~= 2 bufs of A(kt bf16) + 2 bufs of out(Co bf16) + acc(Co f32)
    per_lane = 2 * kt * 2 + 2 * Co * 2 + Co * 4
    sd_t, sd_pad = _choose_sd_tile(sd, per_lane, vmem // 3, max_tile=2048)

    if K_pad != K or sd_pad != sd:                  # zero padding is GEMM-neutral
        a_cols = jnp.pad(a_cols, ((0, 0), (0, K_pad - K), (0, sd_pad - sd)))
    if K_pad != K:
        w_mat = jnp.pad(w_mat, ((0, 0), (0, K_pad - K)))

    grid = (N, sd_pad // sd_t, K_pad // kt)
    # TODO(synk): try pipeline_mode=pl.Buffered(3) on the A spec once tiles are sized.
    out = pl.pallas_call(
        _down_gemm_relu_kernel,
        grid=grid,
        in_specs=[
            pl.BlockSpec((1, kt, sd_t), lambda n, s, k: (n, k, s)),
            pl.BlockSpec((Co, kt), lambda n, s, k: (0, k)),
            pl.BlockSpec((Co, 1), lambda n, s, k: (0, 0)),
        ],
        out_specs=pl.BlockSpec((1, Co, sd_t), lambda n, s, k: (n, 0, s)),
        out_shape=jax.ShapeDtypeStruct((N, Co, sd_pad), out_dtype),
        scratch_shapes=[pltpu.VMEM((Co, sd_t), jnp.float32)],
        compiler_params=pltpu.CompilerParams(
            dimension_semantics=("parallel", "parallel", "arbitrary"),
            vmem_limit_bytes=vmem,
        ),
    )(a_cols.astype(jnp.bfloat16), w_mat.astype(jnp.bfloat16),
      bias.reshape(Co, 1).astype(jnp.float32))
    return out[:, :, :sd] if sd_pad != sd else out


def conv_up_instancenorm(a_cols, w_mats, *, eps=1e-5, out_dtype=jnp.bfloat16):
    """a_cols: (N, 8, K, sd) K-major parity im2col, w_mats: (8, Cout, K).
    Two-pass: parity GEMMs + stats partials, tiny XLA moment finalize, normalize.
    Returns instance-normalized parity outputs (N, 8, Cout, sd) in `out_dtype`."""
    N, P, K, sd = a_cols.shape
    Cout = w_mats.shape[1]
    vmem = _vmem_limit_bytes()

    # per-lane VMEM (pass 1): 2 bufs of A (P*K bf16) + 2 bufs of y out (P*Cout bf16)
    per_lane = 2 * P * K * 2 + 2 * P * Cout * 2
    sd_t, sd_pad = _choose_sd_tile(sd, per_lane, vmem // 3, max_tile=1024)
    if sd_pad != sd:                                # zero columns -> zero partials
        a_cols = jnp.pad(a_cols, ((0, 0), (0, 0), (0, 0), (0, sd_pad - sd)))
    n_sd = sd_pad // sd_t
    grid = (N, n_sd)
    cparams = pltpu.CompilerParams(
        dimension_semantics=("parallel", "parallel"), vmem_limit_bytes=vmem)

    y, s1, s2 = pl.pallas_call(
        _up_gemm_stats_kernel,
        grid=grid,
        in_specs=[
            pl.BlockSpec((1, P, K, sd_t), lambda n, s: (n, 0, 0, s)),
            pl.BlockSpec((P, Cout, K), lambda n, s: (0, 0, 0)),
        ],
        out_specs=(
            pl.BlockSpec((1, P, Cout, sd_t), lambda n, s: (n, 0, 0, s)),
            pl.BlockSpec((1, 1, Cout, 1), lambda n, s: (s, n, 0, 0)),
            pl.BlockSpec((1, 1, Cout, 1), lambda n, s: (s, n, 0, 0)),
        ),
        out_shape=(
            jax.ShapeDtypeStruct((N, P, Cout, sd_pad), jnp.bfloat16),
            jax.ShapeDtypeStruct((n_sd, N, Cout, 1), jnp.float32),
            jax.ShapeDtypeStruct((n_sd, N, Cout, 1), jnp.float32),
        ),
        compiler_params=cparams,
    )(a_cols.astype(jnp.bfloat16), w_mats.astype(jnp.bfloat16))

    # tiny cross-tile reduce + moment finalize in XLA (n_sd*N*Cout floats)
    npix = float(P * sd)                            # padded lanes contributed zeros
    mean = jnp.sum(s1, axis=0)[..., 0] / npix       # (N, Cout)
    var = jnp.sum(s2, axis=0)[..., 0] / npix - mean * mean
    rstd = lax.rsqrt(var + eps)
    mean = mean[..., None].astype(jnp.float32)      # (N, Cout, 1)
    rstd = rstd[..., None].astype(jnp.float32)

    yn = pl.pallas_call(
        _up_norm_kernel,
        grid=grid,
        in_specs=[
            pl.BlockSpec((1, P, Cout, sd_t), lambda n, s: (n, 0, 0, s)),
            pl.BlockSpec((1, Cout, 1), lambda n, s: (n, 0, 0)),
            pl.BlockSpec((1, Cout, 1), lambda n, s: (n, 0, 0)),
        ],
        out_specs=pl.BlockSpec((1, P, Cout, sd_t), lambda n, s: (n, 0, 0, s)),
        out_shape=jax.ShapeDtypeStruct((N, P, Cout, sd_pad), out_dtype),
        compiler_params=cparams,
    )(y, mean, rstd)
    return yn[..., :sd] if sd_pad != sd else yn


# ---------------------------------------------------------------------------
# Plain-JAX glue: K-major patch gathers (no transpose of the replicated tensor)
# ---------------------------------------------------------------------------
def im2col_down_kmajor(x, k=4, stride=2, pad=1):
    """x: (N, C, D, H, W) -> ((N, C*k^3, Do*Ho*Wo), (Do, Ho, Wo)).
    K ordering (ci, kd, kh, kw) matches w.reshape(Cout, -1); no transpose needed."""
    N, C, D, H, W = x.shape
    xp = jnp.pad(x, ((0, 0), (0, 0), (pad, pad), (pad, pad), (pad, pad)))
    Do = (D + 2 * pad - k) // stride + 1
    Ho = (H + 2 * pad - k) // stride + 1
    Wo = (W + 2 * pad - k) // stride + 1
    taps = []
    for kd in range(k):
        for kh in range(k):
            for kw in range(k):
                taps.append(xp[:, :,
                               kd: kd + stride * Do: stride,
                               kh: kh + stride * Ho: stride,
                               kw: kw + stride * Wo: stride])
    cols = jnp.stack(taps, axis=2)                  # (N, C, k^3, Do, Ho, Wo)
    return cols.reshape(N, C * k * k * k, Do * Ho * Wo), (Do, Ho, Wo)


_PARITIES = [(pd, ph, pw) for pd in (0, 1) for ph in (0, 1) for pw in (0, 1)]


def im2col_up_parity_kmajor(yd5):
    """Parity-decomposed K-major im2col for ConvTranspose3d(k=4, s=2, p=1).
    Output voxel o = 2j + p only receives 2 taps per dim (weight index 3-p-2d),
    so only 8 of the 64 taps are non-zero.
    yd5: (N, C, Do, Ho, Wo) -> (N, 8, C*8, Do*Ho*Wo), K ordered (ci, dd, dh, dw)."""
    N, C, Do, Ho, Wo = yd5.shape
    yp = jnp.pad(yd5, ((0, 0), (0, 0), (1, 1), (1, 1), (1, 1)))
    per_parity = []
    for pd, ph, pw in _PARITIES:
        taps = []
        for dd in (0, 1):
            for dh in (0, 1):
                for dw in (0, 1):
                    taps.append(yp[:, :,
                                   pd + dd: pd + dd + Do,
                                   ph + dh: ph + dh + Ho,
                                   pw + dw: pw + dw + Wo])
        t = jnp.stack(taps, axis=2)                 # (N, C, 8, Do, Ho, Wo)
        per_parity.append(t.reshape(N, C * 8, Do * Ho * Wo))
    return jnp.stack(per_parity, axis=1)            # (N, 8, C*8, sd)


def upconv_parity_weights(w_up):
    """w_up: (Cin, Cout, 4, 4, 4) ConvTranspose3d weight -> (8, Cout, Cin*8),
    columns ordered (ci, dd, dh, dw) to match im2col_up_parity_kmajor."""
    Cin, Cout = w_up.shape[:2]
    mats = []
    for pd, ph, pw in _PARITIES:
        sub = w_up[:, :, [3 - pd, 1 - pd], :, :]
        sub = sub[:, :, :, [3 - ph, 1 - ph], :]
        sub = sub[:, :, :, :, [3 - pw, 1 - pw]]     # (Cin, Cout, 2, 2, 2)
        mats.append(sub.transpose(1, 0, 2, 3, 4).reshape(Cout, Cin * 8))
    return jnp.stack(mats, axis=0)                  # (8, Cout, Cin*8)


# ---------------------------------------------------------------------------
# UnetBlock (innermost) forward
# ---------------------------------------------------------------------------
def unet_block_forward(x, w_down, b_down, w_up, b_up):
    """x: (N, Cin, D, H, W) f32. Returns concat([x, block(x)], axis=1).
    Note: b_up is intentionally unused - InstanceNorm (affine=False) cancels a
    per-channel bias exactly, so dropping the add is semantics-preserving."""
    del b_up
    N, Cin, D, H, W = x.shape
    inner = w_down.shape[0]
    Cout = w_up.shape[1]

    # LeakyReLU(0.2) hoisted (leaky(0)=0 keeps im2col zero-padding valid);
    # bf16 cast hoisted before im2col so the column matrix is built in bf16.
    xa = jnp.where(x >= 0.0, x, 0.2 * x).astype(jnp.bfloat16)

    # ----- down: Conv3d(k=4, s=2, p=1); up-path ReLU fused into the epilogue --
    a_dn, (Do, Ho, Wo) = im2col_down_kmajor(xa)              # (N, Cin*64, sd)
    w_dn = w_down.reshape(inner, -1)                         # (inner, Cin*64)
    yd = conv_down_relu(a_dn, w_dn, b_down)                  # (N, inner, sd) bf16
    yd5 = yd.reshape(N, inner, Do, Ho, Wo)

    # ----- up: ConvTranspose3d(k=4, s=2, p=1) as 8 parity GEMMs + 2-pass IN ---
    a_up = im2col_up_parity_kmajor(yd5)                      # (N, 8, inner*8, sd)
    w_upm = upconv_parity_weights(w_up)                      # (8, Cout, inner*8)
    yn_par = conv_up_instancenorm(a_up, w_upm)               # (N, 8, Cout, sd) bf16

    # interleave the 8 parity sub-grids back to (N, Cout, 2Do, 2Ho, 2Wo) (bf16)
    yn = yn_par.reshape(N, 2, 2, 2, Cout, Do, Ho, Wo)
    yn = yn.transpose(0, 4, 5, 1, 6, 2, 7, 3).reshape(N, Cout, 2 * Do, 2 * Ho, 2 * Wo)

    # ----- skip connection: torch.cat([x, model(x)], dim=1) -------------------
    return jnp.concatenate([x, yn.astype(x.dtype)], axis=1)


# ---------------------------------------------------------------------------
# Pure-JAX reference (lax convolutions) for a sanity check
# ---------------------------------------------------------------------------
def reference_forward(x, w_down, b_down, w_up, b_up):
    dn = lax.conv_dimension_numbers(x.shape, w_down.shape, ("NCDHW", "OIDHW", "NCDHW"))
    xd = jnp.where(x >= 0.0, x, 0.2 * x)
    yd = lax.conv_general_dilated(
        xd, w_down, (2, 2, 2), [(1, 1)] * 3, dimension_numbers=dn,
        precision=lax.Precision.HIGHEST,
    ) + b_down[None, :, None, None, None]
    yr = jnp.maximum(yd, 0.0)
    w_eq = jnp.flip(w_up, axis=(2, 3, 4)).transpose(1, 0, 2, 3, 4)
    yu = lax.conv_general_dilated(
        yr, w_eq, (1, 1, 1), [(2, 2)] * 3, lhs_dilation=(2, 2, 2),
        dimension_numbers=dn, precision=lax.Precision.HIGHEST,
    ) + b_up[None, :, None, None, None]
    mean = jnp.mean(yu, axis=(2, 3, 4), keepdims=True)
    var = jnp.mean((yu - mean) ** 2, axis=(2, 3, 4), keepdims=True)
    yn = (yu - mean) * lax.rsqrt(var + 1e-5)
    return jnp.concatenate([x, yn], axis=1)


# ---------------------------------------------------------------------------
if __name__ == "__main__":
    # Small shapes consistent with the module: innermost UnetBlock
    N, Cin, D = 2, 4, 8          # input (2, 4, 8, 8, 8) in NCDHW
    inner, Cout = 8, 4

    key = jax.random.PRNGKey(0)
    k_x, k_wd, k_bd, k_wu, k_bu = jax.random.split(key, 5)
    x = jax.random.normal(k_x, (N, Cin, D, D, D), dtype=jnp.float32)
    # Conv3d(in=Cin, out=inner, k=4): weight (inner, Cin, 4, 4, 4)
    w_down = 0.1 * jax.random.normal(k_wd, (inner, Cin, 4, 4, 4), dtype=jnp.float32)
    b_down = 0.1 * jax.random.normal(k_bd, (inner,), dtype=jnp.float32)
    # ConvTranspose3d(in=inner, out=Cout, k=4): weight (inner, Cout, 4, 4, 4)
    w_up = 0.1 * jax.random.normal(k_wu, (inner, Cout, 4, 4, 4), dtype=jnp.float32)
    b_up = 0.1 * jax.random.normal(k_bu, (Cout,), dtype=jnp.float32)

    out = jax.jit(unet_block_forward)(x, w_down, b_down, w_up, b_up)
    out = jax.block_until_ready(out)

    ref = jax.block_until_ready(reference_forward(x, w_down, b_down, w_up, b_up))

    assert out.shape == (N, Cin + Cout, D, D, D), out.shape
    assert bool(jnp.all(jnp.isfinite(out)))
    assert bool(jnp.allclose(out, ref, atol=5e-2, rtol=5e-2)), float(
        jnp.max(jnp.abs(out - ref))
    )
    print("KERNEL_OK")
</pallas_src>

<mosaic_0001>
module attributes {stable_mosaic.version = 11 : i64} {
  func.func @_down_gemm_relu_kernel(%arg0: i32, %arg1: i32, %arg2: i32, %arg3: memref<1x256x64xbf16, #tpu.memory_space<vmem>>, %arg4: memref<8x256xbf16, #tpu.memory_space<vmem>>, %arg5: memref<8x1xf32, #tpu.memory_space<vmem>>, %arg6: memref<1x8x64xbf16, #tpu.memory_space<vmem>>, %arg7: memref<8x64xf32, #tpu.memory_space<vmem>>) attributes {dimension_semantics = [#tpu.dimension_semantics<parallel>, #tpu.dimension_semantics<parallel>, #tpu.dimension_semantics<arbitrary>], iteration_bounds = array<i64: 2, 1, 1>, scalar_prefetch = 0 : i64, scratch_operands = 1 : i64, tpu.core_type = #tpu.core_type<tc>, window_params = [{transform_indices = @transform_0, window_bounds = array<i64: 1, 256, 64>}, {transform_indices = @transform_1, window_bounds = array<i64: 8, 256>}, {pipeline_mode = #tpu.pipeline_mode<synchronous>, transform_indices = @transform_2, window_bounds = array<i64: 8, 1>}, {transform_indices = @transform_3, window_bounds = array<i64: 1, 8, 64>}]} {
    %c0_i32 = arith.constant 0 : i32
    %0 = arith.cmpi eq, %arg2, %c0_i32 : i32
    %1 = arith.extui %0 : i1 to i32
    %c0_i32_0 = arith.constant 0 : i32
    %2 = arith.cmpi ne, %1, %c0_i32_0 : i32
    scf.if %2 {
      %cst_11 = arith.constant 0.000000e+00 : f32
      %13 = vector.broadcast %cst_11 : f32 to vector<8x64xf32>
      %c0_12 = arith.constant 0 : index
      %c0_13 = arith.constant 0 : index
      %14 = vector.load %arg7[%c0_12, %c0_13] : memref<8x64xf32, #tpu.memory_space<vmem>>, vector<8x64xf32>
      tpu.vector_store %arg7[%c0_12, %c0_13], %13 {strides = array<i32>} : memref<8x64xf32, #tpu.memory_space<vmem>>, vector<8x64xf32>,
    } else {
    }
    %c0 = arith.constant 0 : index
    %c0_1 = arith.constant 0 : index
    %c0_2 = arith.constant 0 : index
    %3 = vector.load %arg3[%c0, %c0_1, %c0_2] : memref<1x256x64xbf16, #tpu.memory_space<vmem>>, vector<1x256x64xbf16>
    %4 = vector.shape_cast %3 : vector<1x256x64xbf16> to vector<256x64xbf16>
    %c0_3 = arith.constant 0 : index
    %c0_4 = arith.constant 0 : index
    %5 = vector.load %arg4[%c0_3, %c0_4] : memref<8x256xbf16, #tpu.memory_space<vmem>>, vector<8x256xbf16>
    %c0_5 = arith.constant 0 : index
    %c0_6 = arith.constant 0 : index
    %6 = vector.load %arg7[%c0_5, %c0_6] : memref<8x64xf32, #tpu.memory_space<vmem>>, vector<8x64xf32>
    %cst = arith.constant dense<0.000000e+00> : vector<8x64xf32>
    %7 = tpu.matmul %5, %4, %cst {dimension_numbers = #tpu.dot_dimension_numbers<[1], [0], [0], [1], [0, 0, 1, 1], [], []>} : vector<8x256xbf16>, vector<256x64xbf16>, vector<8x64xf32> -> vector<8x64xf32>
    %8 = arith.addf %6, %7 : vector<8x64xf32>
    %c0_7 = arith.constant 0 : index
    %c0_8 = arith.constant 0 : index
    %9 = vector.load %arg7[%c0_7, %c0_8] : memref<8x64xf32, #tpu.memory_space<vmem>>, vector<8x64xf32>
    tpu.vector_store %arg7[%c0_7, %c0_8], %8 {strides = array<i32>} : memref<8x64xf32, #tpu.memory_space<vmem>>, vector<8x64xf32>,
    %c0_i32_9 = arith.constant 0 : i32
    %10 = arith.cmpi eq, %arg2, %c0_i32_9 : i32
    %11 = arith.extui %10 : i1 to i32
    %c0_i32_10 = arith.constant 0 : i32
    %12 = arith.cmpi ne, %11, %c0_i32_10 : i32
    scf.if %12 {
      %c0_11 = arith.constant 0 : index
      %c0_12 = arith.constant 0 : index
      %13 = vector.load %arg7[%c0_11, %c0_12] : memref<8x64xf32, #tpu.memory_space<vmem>>, vector<8x64xf32>
      %c0_13 = arith.constant 0 : index
      %c0_14 = arith.constant 0 : index
      %14 = vector.load %arg5[%c0_13, %c0_14] : memref<8x1xf32, #tpu.memory_space<vmem>>, vector<8x1xf32>
      %15 = vector.broadcast %14 : vector<8x1xf32> to vector<8x64xf32>
      %16 = arith.addf %13, %15 : vector<8x64xf32>
      %cst_15 = arith.constant 0.000000e+00 : f32
      %17 = vector.broadcast %cst_15 : f32 to vector<8x64xf32>
      %18 = arith.maximumf %16, %17 : vector<8x64xf32>
      %19 = arith.truncf %18 : vector<8x64xf32> to vector<8x64xbf16>
      %c0_16 = arith.constant 0 : index
      %c0_17 = arith.constant 0 : index
      %c0_18 = arith.constant 0 : index
      %20 = vector.load %arg6[%c0_16, %c0_17, %c0_18] : memref<1x8x64xbf16, #tpu.memory_space<vmem>>, vector<1x8x64xbf16>
      %21 = vector.shape_cast %20 : vector<1x8x64xbf16> to vector<8x64xbf16>
      %22 = vector.shape_cast %19 : vector<8x64xbf16> to vector<1x8x64xbf16>
      tpu.vector_store %arg6[%c0_16, %c0_17, %c0_18], %22 {strides = array<i32>} : memref<1x8x64xbf16, #tpu.memory_space<vmem>>, vector<1x8x64xbf16>,
    } else {
    }
    return
  }
  func.func @transform_0(%arg0: i32, %arg1: i32, %arg2: i32) -> (i32, i32, i32) {
    %c0_i32 = arith.constant 0 : i32
    return %arg0, %arg2, %arg1 : i32, i32, i32
  }
  func.func @transform_1(%arg0: i32, %arg1: i32, %arg2: i32) -> (i32, i32) {
    %c0_i32 = arith.constant 0 : i32
    %c0_i32_0 = arith.constant 0 : i32
    return %c0_i32, %arg2 : i32, i32
  }
  func.func @transform_2(%arg0: i32, %arg1: i32, %arg2: i32) -> (i32, i32) {
    %c0_i32 = arith.constant 0 : i32
    %c0_i32_0 = arith.constant 0 : i32
    %c0_i32_1 = arith.constant 0 : i32
    return %c0_i32, %c0_i32_0 : i32, i32
  }
  func.func @transform_3(%arg0: i32, %arg1: i32, %arg2: i32) -> (i32, i32, i32) {
    %c0_i32 = arith.constant 0 : i32
    %c0_i32_0 = arith.constant 0 : i32
    return %arg0, %c0_i32, %arg1 : i32, i32, i32
  }
}

module attributes {stable_mosaic.version = 11 : i64} {
  func.func @_up_gemm_stats_kernel(%arg0: i32, %arg1: i32, %arg2: memref<1x8x64x64xbf16, #tpu.memory_space<vmem>>, %arg3: memref<8x4x64xbf16, #tpu.memory_space<vmem>>, %arg4: memref<1x8x4x64xbf16, #tpu.memory_space<vmem>>, %arg5: memref<1x1x4x1xf32, #tpu.memory_space<vmem>>, %arg6: memref<1x1x4x1xf32, #tpu.memory_space<vmem>>) attributes {dimension_semantics = [#tpu.dimension_semantics<parallel>, #tpu.dimension_semantics<parallel>], iteration_bounds = array<i64: 2, 1>, scalar_prefetch = 0 : i64, scratch_operands = 0 : i64, tpu.core_type = #tpu.core_type<tc>, window_params = [{transform_indices = @transform_0, window_bounds = array<i64: 1, 8, 64, 64>}, {pipeline_mode = #tpu.pipeline_mode<synchronous>, transform_indices = @transform_1, window_bounds = array<i64: 8, 4, 64>}, {transform_indices = @transform_2, window_bounds = array<i64: 1, 8, 4, 64>}, {transform_indices = @transform_3, window_bounds = array<i64: 1, 1, 4, 1>}, {transform_indices = @transform_4, window_bounds = array<i64: 1, 1, 4, 1>}]} {
    %cst = arith.constant 0.000000e+00 : f32
    %0 = vector.broadcast %cst : f32 to vector<4x1xf32>
    %cst_0 = arith.constant 0.000000e+00 : f32
    %1 = vector.broadcast %cst_0 : f32 to vector<4x1xf32>
    %c0 = arith.constant 0 : index
    %c0_1 = arith.constant 0 : index
    %c0_2 = arith.constant 0 : index
    %2 = vector.load %arg3[%c0, %c0_1, %c0_2] : memref<8x4x64xbf16, #tpu.memory_space<vmem>>, vector<1x4x64xbf16>
    %3 = vector.shape_cast %2 : vector<1x4x64xbf16> to vector<4x64xbf16>
    %c0_3 = arith.constant 0 : index
    %c0_4 = arith.constant 0 : index
    %c0_5 = arith.constant 0 : index
    %c0_6 = arith.constant 0 : index
    %4 = vector.load %arg2[%c0_3, %c0_4, %c0_5, %c0_6] : memref<1x8x64x64xbf16, #tpu.memory_space<vmem>>, vector<1x1x64x64xbf16>
    %5 = vector.shape_cast %4 : vector<1x1x64x64xbf16> to vector<64x64xbf16>
    %cst_7 = arith.constant dense<0.000000e+00> : vector<4x64xf32>
    %6 = tpu.matmul %3, %5, %cst_7 {dimension_numbers = #tpu.dot_dimension_numbers<[1], [0], [0], [1], [0, 0, 1, 1], [], []>} : vector<4x64xbf16>, vector<64x64xbf16>, vector<4x64xf32> -> vector<4x64xf32>
    %7 = arith.truncf %6 : vector<4x64xf32> to vector<4x64xbf16>
    %c0_8 = arith.constant 0 : index
    %c0_9 = arith.constant 0 : index
    %c0_10 = arith.constant 0 : index
    %c0_11 = arith.constant 0 : index
    %8 = vector.load %arg4[%c0_8, %c0_9, %c0_10, %c0_11] : memref<1x8x4x64xbf16, #tpu.memory_space<vmem>>, vector<1x1x4x64xbf16>
    %9 = vector.shape_cast %8 : vector<1x1x4x64xbf16> to vector<4x64xbf16>
    %10 = vector.shape_cast %7 : vector<4x64xbf16> to vector<1x1x4x64xbf16>
    tpu.vector_store %arg4[%c0_8, %c0_9, %c0_10, %c0_11], %10 {strides = array<i32>} : memref<1x8x4x64xbf16, #tpu.memory_space<vmem>>, vector<1x1x4x64xbf16>,
    %cst_12 = arith.constant dense<0.000000e+00> : vector<4xf32>
    %11 = vector.multi_reduction <add>, %6, %cst_12 [1] : vector<4x64xf32> to vector<4xf32>
    %12 = vector.shape_cast %11 : vector<4xf32> to vector<4x1xf32>
    %13 = arith.addf %0, %12 : vector<4x1xf32>
    %14 = arith.mulf %6, %6 : vector<4x64xf32>
    %cst_13 = arith.constant dense<0.000000e+00> : vector<4xf32>
    %15 = vector.multi_reduction <add>, %14, %cst_13 [1] : vector<4x64xf32> to vector<4xf32>
    %16 = vector.shape_cast %15 : vector<4xf32> to vector<4x1xf32>
    %17 = arith.addf %1, %16 : vector<4x1xf32>
    %c1 = arith.constant 1 : index
    %c0_14 = arith.constant 0 : index
    %c0_15 = arith.constant 0 : index
    %18 = vector.load %arg3[%c1, %c0_14, %c0_15] : memref<8x4x64xbf16, #tpu.memory_space<vmem>>, vector<1x4x64xbf16>
    %19 = vector.shape_cast %18 : vector<1x4x64xbf16> to vector<4x64xbf16>
    %c0_16 = arith.constant 0 : index
    %c1_17 = arith.constant 1 : index
    %c0_18 = arith.constant 0 : index
    %c0_19 = arith.constant 0 : index
    %20 = vector.load %arg2[%c0_16, %c1_17, %c0_18, %c0_19] : memref<1x8x64x64xbf16, #tpu.memory_space<vmem>>, vector<1x1x64x64xbf16>
    %21 = vector.shape_cast %20 : vector<1x1x64x64xbf16> to vector<64x64xbf16>
    %cst_20 = arith.constant dense<0.000000e+00> : vector<4x64xf32>
    %22 = tpu.matmul %19, %21, %cst_20 {dimension_numbers = #tpu.dot_dimension_numbers<[1], [0], [0], [1], [0, 0, 1, 1], [], []>} : vector<4x64xbf16>, vector<64x64xbf16>, vector<4x64xf32> -> vector<4x64xf32>
    %23 = arith.truncf %22 : vector<4x64xf32> to vector<4x64xbf16>
    %c0_21 = arith.constant 0 : index
    %c1_22 = arith.constant 1 : index
    %c0_23 = arith.constant 0 : index
    %c0_24 = arith.constant 0 : index
    %24 = vector.load %arg4[%c0_21, %c1_22, %c0_23, %c0_24] : memref<1x8x4x64xbf16, #tpu.memory_space<vmem>>, vector<1x1x4x64xbf16>
    %25 = vector.shape_cast %24 : vector<1x1x4x64xbf16> to vector<4x64xbf16>
    %26 = vector.shape_cast %23 : vector<4x64xbf16> to vector<1x1x4x64xbf16>
    tpu.vector_store %arg4[%c0_21, %c1_22, %c0_23, %c0_24], %26 {strides = array<i32>} : memref<1x8x4x64xbf16, #tpu.memory_space<vmem>>, vector<1x1x4x64xbf16>,
    %cst_25 = arith.constant dense<0.000000e+00> : vector<4xf32>
    %27 = vector.multi_reduction <add>, %22, %cst_25 [1] : vector<4x64xf32> to vector<4xf32>
    %28 = vector.shape_cast %27 : vector<4xf32> to vector<4x1xf32>
    %29 = arith.addf %13, %28 : vector<4x1xf32>
    %30 = arith.mulf %22, %22 : vector<4x64xf32>
    %cst_26 = arith.constant dense<0.000000e+00> : vector<4xf32>
    %31 = vector.multi_reduction <add>, %30, %cst_26 [1] : vector<4x64xf32> to vector<4xf32>
    %32 = vector.shape_cast %31 : vector<4xf32> to vector<4x1xf32>
    %33 = arith.addf %17, %32 : vector<4x1xf32>
    %c2 = arith.constant 2 : index
    %c0_27 = arith.constant 0 : index
    %c0_28 = arith.constant 0 : index
    %34 = vector.load %arg3[%c2, %c0_27, %c0_28] : memref<8x4x64xbf16, #tpu.memory_space<vmem>>, vector<1x4x64xbf16>
    %35 = vector.shape_cast %34 : vector<1x4x64xbf16> to vector<4x64xbf16>
    %c0_29 = arith.constant 0 : index
    %c2_30 = arith.constant 2 : index
    %c0_31 = arith.constant 0 : index
    %c0_32 = arith.constant 0 : index
    %36 = vector.load %arg2[%c0_29, %c2_30, %c0_31, %c0_32] : memref<1x8x64x64xbf16, #tpu.memory_space<vmem>>, vector<1x1x64x64xbf16>
    %37 = vector.shape_cast %36 : vector<1x1x64x64xbf16> to vector<64x64xbf16>
    %cst_33 = arith.constant dense<0.000000e+00> : vector<4x64xf32>
    %38 = tpu.matmul %35, %37, %cst_33 {dimension_numbers = #tpu.dot_dimension_numbers<[1], [0], [0], [1], [0, 0, 1, 1], [], []>} : vector<4x64xbf16>, vector<64x64xbf16>, vector<4x64xf32> -> vector<4x64xf32>
    %39 = arith.truncf %38 : vector<4x64xf32> to vector<4x64xbf16>
    %c0_34 = arith.constant 0 : index
    %c2_35 = arith.constant 2 : index
    %c0_36 = arith.constant 0 : index
    %c0_37 = arith.constant 0 : index
    %40 = vector.load %arg4[%c0_34, %c2_35, %c0_36, %c0_37] : memref<1x8x4x64xbf16, #tpu.memory_space<vmem>>, vector<1x1x4x64xbf16>
    %41 = vector.shape_cast %40 : vector<1x1x4x64xbf16> to vector<4x64xbf16>
    %42 = vector.shape_cast %39 : vector<4x64xbf16> to vector<1x1x4x64xbf16>
    tpu.vector_store %arg4[%c0_34, %c2_35, %c0_36, %c0_37], %42 {strides = array<i32>} : memref<1x8x4x64xbf16, #tpu.memory_space<vmem>>, vector<1x1x4x64xbf16>,
    %cst_38 = arith.constant dense<0.000000e+00> : vector<4xf32>
    %43 = vector.multi_reduction <add>, %38, %cst_38 [1] : vector<4x64xf32> to vector<4xf32>
    %44 = vector.shape_cast %43 : vector<4xf32> to vector<4x1xf32>
    %45 = arith.addf %29, %44 : vector<4x1xf32>
    %46 = arith.mulf %38, %38 : vector<4x64xf32>
    %cst_39 = arith.constant dense<0.000000e+00> : vector<4xf32>
    %47 = vector.multi_reduction <add>, %46, %cst_39 [1] : vector<4x64xf32> to vector<4xf32>
    %48 = vector.shape_cast %47 : vector<4xf32> to vector<4x1xf32>
    %49 = arith.addf %33, %48 : vector<4x1xf32>
    %c3 = arith.constant 3 : index
    %c0_40 = arith.constant 0 : index
    %c0_41 = arith.constant 0 : index
    %50 = vector.load %arg3[%c3, %c0_40, %c0_41] : memref<8x4x64xbf16, #tpu.memory_space<vmem>>, vector<1x4x64xbf16>
    %51 = vector.shape_cast %50 : vector<1x4x64xbf16> to vector<4x64xbf16>
    %c0_42 = arith.constant 0 : index
    %c3_43 = arith.constant 3 : index
    %c0_44 = arith.constant 0 : index
    %c0_45 = arith.constant 0 : index
    %52 = vector.load %arg2[%c0_42, %c3_43, %c0_44, %c0_45] : memref<1x8x64x64xbf16, #tpu.memory_space<vmem>>, vector<1x1x64x64xbf16>
    %53 = vector.shape_cast %52 : vector<1x1x64x64xbf16> to vector<64x64xbf16>
    %cst_46 = arith.constant dense<0.000000e+00> : vector<4x64xf32>
    %54 = tpu.matmul %51, %53, %cst_46 {dimension_numbers = #tpu.dot_dimension_numbers<[1], [0], [0], [1], [0, 0, 1, 1], [], []>} : vector<4x64xbf16>, vector<64x64xbf16>, vector<4x64xf32> -> vector<4x64xf32>
    %55 = arith.truncf %54 : vector<4x64xf32> to vector<4x64xbf16>
    %c0_47 = arith.constant 0 : index
    %c3_48 = arith.constant 3 : index
    %c0_49 = arith.constant 0 : index
    %c0_50 = arith.constant 0 : index
    %56 = vector.load %arg4[%c0_47, %c3_48, %c0_49, %c0_50] : memref<1x8x4x64xbf16, #tpu.memory_space<vmem>>, vector<1x1x4x64xbf16>
    %57 = vector.shape_cast %56 : vector<1x1x4x64xbf16> to vector<4x64xbf16>
    %58 = vector.shape_cast %55 : vector<4x64xbf16> to vector<1x1x4x64xbf16>
    tpu.vector_store %arg4[%c0_47, %c3_48, %c0_49, %c0_50], %58 {strides = array<i32>} : memref<1x8x4x64xbf16, #tpu.memory_space<vmem>>, vector<1x1x4x64xbf16>,
    %cst_51 = arith.constant dense<0.000000e+00> : vector<4xf32>
    %59 = vector.multi_reduction <add>, %54, %cst_51 [1] : vector<4x64xf32> to vector<4xf32>
    %60 = vector.shape_cast %59 : vector<4xf32> to vector<4x1xf32>
    %61 = arith.addf %45, %60 : vector<4x1xf32>
    %62 = arith.mulf %54, %54 : vector<4x64xf32>
    %cst_52 = arith.constant dense<0.000000e+00> : vector<4xf32>
    %63 = vector.multi_reduction <add>, %62, %cst_52 [1] : vector<4x64xf32> to vector<4xf32>
    %64 = vector.shape_cast %63 : vector<4xf32> to vector<4x1xf32>
    %65 = arith.addf %49, %64 : vector<4x1xf32>
    %c4 = arith.constant 4 : index
    %c0_53 = arith.constant 0 : index
    %c0_54 = arith.constant 0 : index
    %66 = vector.load %arg3[%c4, %c0_53, %c0_54] : memref<8x4x64xbf16, #tpu.memory_space<vmem>>, vector<1x4x64xbf16>
    %67 = vector.shape_cast %66 : vector<1x4x64xbf16> to vector<4x64xbf16>
    %c0_55 = arith.constant 0 : index
    %c4_56 = arith.constant 4 : index
    %c0_57 = arith.constant 0 : index
    %c0_58 = arith.constant 0 : index
    %68 = vector.load %arg2[%c0_55, %c4_56, %c0_57, %c0_58] : memref<1x8x64x64xbf16, #tpu.memory_space<vmem>>, vector<1x1x64x64xbf16>
    %69 = vector.shape_cast %68 : vector<1x1x64x64xbf16> to vector<64x64xbf16>
    %cst_59 = arith.constant dense<0.000000e+00> : vector<4x64xf32>
    %70 = tpu.matmul %67, %69, %cst_59 {dimension_numbers = #tpu.dot_dimension_numbers<[1], [0], [0], [1], [0, 0, 1, 1], [], []>} : vector<4x64xbf16>, vector<64x64xbf16>, vector<4x64xf32> -> vector<4x64xf32>
    %71 = arith.truncf %70 : vector<4x64xf32> to vector<4x64xbf16>
    %c0_60 = arith.constant 0 : index
    %c4_61 = arith.constant 4 : index
    %c0_62 = arith.constant 0 : index
    %c0_63 = arith.constant 0 : index
    %72 = vector.load %arg4[%c0_60, %c4_61, %c0_62, %c0_63] : memref<1x8x4x64xbf16, #tpu.memory_space<vmem>>, vector<1x1x4x64xbf16>
    %73 = vector.shape_cast %72 : vector<1x1x4x64xbf16> to vector<4x64xbf16>
    %74 = vector.shape_cast %71 : vector<4x64xbf16> to vector<1x1x4x64xbf16>
    tpu.vector_store %arg4[%c0_60, %c4_61, %c0_62, %c0_63], %74 {strides = array<i32>} : memref<1x8x4x64xbf16, #tpu.memory_space<vmem>>, vector<1x1x4x64xbf16>,
    %cst_64 = arith.constant dense<0.000000e+00> : vector<4xf32>
    %75 = vector.multi_reduction <add>, %70, %cst_64 [1] : vector<4x64xf32> to vector<4xf32>
    %76 = vector.shape_cast %75 : vector<4xf32> to vector<4x1xf32>
    %77 = arith.addf %61, %76 : vector<4x1xf32>
    %78 = arith.mulf %70, %70 : vector<4x64xf32>
    %cst_65 = arith.constant dense<0.000000e+00> : vector<4xf32>
    %79 = vector.multi_reduction <add>, %78, %cst_65 [1] : vector<4x64xf32> to vector<4xf32>
    %80 = vector.shape_cast %79 : vector<4xf32> to vector<4x1xf32>
    %81 = arith.addf %65, %80 : vector<4x1xf32>
    %c5 = arith.constant 5 : index
    %c0_66 = arith.constant 0 : index
    %c0_67 = arith.constant 0 : index
    %82 = vector.load %arg3[%c5, %c0_66, %c0_67] : memref<8x4x64xbf16, #tpu.memory_space<vmem>>, vector<1x4x64xbf16>
    %83 = vector.shape_cast %82 : vector<1x4x64xbf16> to vector<4x64xbf16>
    %c0_68 = arith.constant 0 : index
    %c5_69 = arith.constant 5 : index
    %c0_70 = arith.constant 0 : index
    %c0_71 = arith.constant 0 : index
    %84 = vector.load %arg2[%c0_68, %c5_69, %c0_70, %c0_71] : memref<1x8x64x64xbf16, #tpu.memory_space<vmem>>, vector<1x1x64x64xbf16>
    %85 = vector.shape_cast %84 : vector<1x1x64x64xbf16> to vector<64x64xbf16>
    %cst_72 = arith.constant dense<0.000000e+00> : vector<4x64xf32>
    %86 = tpu.matmul %83, %85, %cst_72 {dimension_numbers = #tpu.dot_dimension_numbers<[1], [0], [0], [1], [0, 0, 1, 1], [], []>} : vector<4x64xbf16>, vector<64x64xbf16>, vector<4x64xf32> -> vector<4x64xf32>
    %87 = arith.truncf %86 : vector<4x64xf32> to vector<4x64xbf16>
    %c0_73 = arith.constant 0 : index
    %c5_74 = arith.constant 5 : index
    %c0_75 = arith.constant 0 : index
    %c0_76 = arith.constant 0 : index
    %88 = vector.load %arg4[%c0_73, %c5_74, %c0_75, %c0_76] : memref<1x8x4x64xbf16, #tpu.memory_space<vmem>>, vector<1x1x4x64xbf16>
    %89 = vector.shape_cast %88 : vector<1x1x4x64xbf16> to vector<4x64xbf16>
    %90 = vector.shape_cast %87 : vector<4x64xbf16> to vector<1x1x4x64xbf16>
    tpu.vector_store %arg4[%c0_73, %c5_74, %c0_75, %c0_76], %90 {strides = array<i32>} : memref<1x8x4x64xbf16, #tpu.memory_space<vmem>>, vector<1x1x4x64xbf16>,
    %cst_77 = arith.constant dense<0.000000e+00> : vector<4xf32>
    %91 = vector.multi_reduction <add>, %86, %cst_77 [1] : vector<4x64xf32> to vector<4xf32>
    %92 = vector.shape_cast %91 : vector<4xf32> to vector<4x1xf32>
    %93 = arith.addf %77, %92 : vector<4x1xf32>
    %94 = arith.mulf %86, %86 : vector<4x64xf32>
    %cst_78 = arith.constant dense<0.000000e+00> : vector<4xf32>
    %95 = vector.multi_reduction <add>, %94, %cst_78 [1] : vector<4x64xf32> to vector<4xf32>
    %96 = vector.shape_cast %95 : vector<4xf32> to vector<4x1xf32>
    %97 = arith.addf %81, %96 : vector<4x1xf32>
    %c6 = arith.constant 6 : index
    %c0_79 = arith.constant 0 : index
    %c0_80 = arith.constant 0 : index
    %98 = vector.load %arg3[%c6, %c0_79, %c0_80] : memref<8x4x64xbf16, #tpu.memory_space<vmem>>, vector<1x4x64xbf16>
    %99 = vector.shape_cast %98 : vector<1x4x64xbf16> to vector<4x64xbf16>
    %c0_81 = arith.constant 0 : index
    %c6_82 = arith.constant 6 : index
    %c0_83 = arith.constant 0 : index
    %c0_84 = arith.constant 0 : index
    %100 = vector.load %arg2[%c0_81, %c6_82, %c0_83, %c0_84] : memref<1x8x64x64xbf16, #tpu.memory_space<vmem>>, vector<1x1x64x64xbf16>
    %101 = vector.shape_cast %100 : vector<1x1x64x64xbf16> to vector<64x64xbf16>
    %cst_85 = arith.constant dense<0.000000e+00> : vector<4x64xf32>
    %102 = tpu.matmul %99, %101, %cst_85 {dimension_numbers = #tpu.dot_dimension_numbers<[1], [0], [0], [1], [0, 0, 1, 1], [], []>} : vector<4x64xbf16>, vector<64x64xbf16>, vector<4x64xf32> -> vector<4x64xf32>
    %103 = arith.truncf %102 : vector<4x64xf32> to vector<4x64xbf16>
    %c0_86 = arith.constant 0 : index
    %c6_87 = arith.constant 6 : index
    %c0_88 = arith.constant 0 : index
    %c0_89 = arith.constant 0 : index
    %104 = vector.load %arg4[%c0_86, %c6_87, %c0_88, %c0_89] : memref<1x8x4x64xbf16, #tpu.memory_space<vmem>>, vector<1x1x4x64xbf16>
    %105 = vector.shape_cast %104 : vector<1x1x4x64xbf16> to vector<4x64xbf16>
    %106 = vector.shape_cast %103 : vector<4x64xbf16> to vector<1x1x4x64xbf16>
    tpu.vector_store %arg4[%c0_86, %c6_87, %c0_88, %c0_89], %106 {strides = array<i32>} : memref<1x8x4x64xbf16, #tpu.memory_space<vmem>>, vector<1x1x4x64xbf16>,
    %cst_90 = arith.constant dense<0.000000e+00> : vector<4xf32>
    %107 = vector.multi_reduction <add>, %102, %cst_90 [1] : vector<4x64xf32> to vector<4xf32>
    %108 = vector.shape_cast %107 : vector<4xf32> to vector<4x1xf32>
    %109 = arith.addf %93, %108 : vector<4x1xf32>
    %110 = arith.mulf %102, %102 : vector<4x64xf32>
    %cst_91 = arith.constant dense<0.000000e+00> : vector<4xf32>
    %111 = vector.multi_reduction <add>, %110, %cst_91 [1] : vector<4x64xf32> to vector<4xf32>
    %112 = vector.shape_cast %111 : vector<4xf32> to vector<4x1xf32>
    %113 = arith.addf %97, %112 : vector<4x1xf32>
    %c7 = arith.constant 7 : index
    %c0_92 = arith.constant 0 : index
    %c0_93 = arith.constant 0 : index
    %114 = vector.load %arg3[%c7, %c0_92, %c0_93] : memref<8x4x64xbf16, #tpu.memory_space<vmem>>, vector<1x4x64xbf16>
    %115 = vector.shape_cast %114 : vector<1x4x64xbf16> to vector<4x64xbf16>
    %c0_94 = arith.constant 0 : index
    %c7_95 = arith.constant 7 : index
    %c0_96 = arith.constant 0 : index
    %c0_97 = arith.constant 0 : index
    %116 = vector.load %arg2[%c0_94, %c7_95, %c0_96, %c0_97] : memref<1x8x64x64xbf16, #tpu.memory_space<vmem>>, vector<1x1x64x64xbf16>
    %117 = vector.shape_cast %116 : vector<1x1x64x64xbf16> to vector<64x64xbf16>
    %cst_98 = arith.constant dense<0.000000e+00> : vector<4x64xf32>
    %118 = tpu.matmul %115, %117, %cst_98 {dimension_numbers = #tpu.dot_dimension_numbers<[1], [0], [0], [1], [0, 0, 1, 1], [], []>} : vector<4x64xbf16>, vector<64x64xbf16>, vector<4x64xf32> -> vector<4x64xf32>
    %119 = arith.truncf %118 : vector<4x64xf32> to vector<4x64xbf16>
    %c0_99 = arith.constant 0 : index
    %c7_100 = arith.constant 7 : index
    %c0_101 = arith.constant 0 : index
    %c0_102 = arith.constant 0 : index
    %120 = vector.load %arg4[%c0_99, %c7_100, %c0_101, %c0_102] : memref<1x8x4x64xbf16, #tpu.memory_space<vmem>>, vector<1x1x4x64xbf16>
    %121 = vector.shape_cast %120 : vector<1x1x4x64xbf16> to vector<4x64xbf16>
    %122 = vector.shape_cast %119 : vector<4x64xbf16> to vector<1x1x4x64xbf16>
    tpu.vector_store %arg4[%c0_99, %c7_100, %c0_101, %c0_102], %122 {strides = array<i32>} : memref<1x8x4x64xbf16, #tpu.memory_space<vmem>>, vector<1x1x4x64xbf16>,
    %cst_103 = arith.constant dense<0.000000e+00> : vector<4xf32>
    %123 = vector.multi_reduction <add>, %118, %cst_103 [1] : vector<4x64xf32> to vector<4xf32>
    %124 = vector.shape_cast %123 : vector<4xf32> to vector<4x1xf32>
    %125 = arith.addf %109, %124 : vector<4x1xf32>
    %126 = arith.mulf %118, %118 : vector<4x64xf32>
    %cst_104 = arith.constant dense<0.000000e+00> : vector<4xf32>
    %127 = vector.multi_reduction <add>, %126, %cst_104 [1] : vector<4x64xf32> to vector<4xf32>
    %128 = vector.shape_cast %127 : vector<4xf32> to vector<4x1xf32>
    %129 = arith.addf %113, %128 : vector<4x1xf32>
    %c0_105 = arith.constant 0 : index
    %c0_106 = arith.constant 0 : index
    %c0_107 = arith.constant 0 : index
    %c0_108 = arith.constant 0 : index
    %130 = vector.load %arg5[%c0_105, %c0_106, %c0_107, %c0_108] : memref<1x1x4x1xf32, #tpu.memory_space<vmem>>, vector<1x1x4x1xf32>
    %131 = vector.shape_cast %130 : vector<1x1x4x1xf32> to vector<4x1xf32>
    %132 = vector.shape_cast %125 : vector<4x1xf32> to vector<1x1x4x1xf32>
    tpu.vector_store %arg5[%c0_105, %c0_106, %c0_107, %c0_108], %132 {strides = array<i32>} : memref<1x1x4x1xf32, #tpu.memory_space<vmem>>, vector<1x1x4x1xf32>,
    %c0_109 = arith.constant 0 : index
    %c0_110 = arith.constant 0 : index
    %c0_111 = arith.constant 0 : index
    %c0_112 = arith.constant 0 : index
    %133 = vector.load %arg6[%c0_109, %c0_110, %c0_111, %c0_112] : memref<1x1x4x1xf32, #tpu.memory_space<vmem>>, vector<1x1x4x1xf32>
    %134 = vector.shape_cast %133 : vector<1x1x4x1xf32> to vector<4x1xf32>
    %135 = vector.shape_cast %129 : vector<4x1xf32> to vector<1x1x4x1xf32>
    tpu.vector_store %arg6[%c0_109, %c0_110, %c0_111, %c0_112], %135 {strides = array<i32>} : memref<1x1x4x1xf32, #tpu.memory_space<vmem>>, vector<1x1x4x1xf32>,
    return
  }
  func.func @transform_0(%arg0: i32, %arg1: i32) -> (i32, i32, i32, i32) {
    %c0_i32 = arith.constant 0 : i32
    %c0_i32_0 = arith.constant 0 : i32
    %c0_i32_1 = arith.constant 0 : i32
    return %arg0, %c0_i32, %c0_i32_0, %arg1 : i32, i32, i32, i32
  }
  func.func @transform_1(%arg0: i32, %arg1: i32) -> (i32, i32, i32) {
    %c0_i32 = arith.constant 0 : i32
    %c0_i32_0 = arith.constant 0 : i32
    %c0_i32_1 = arith.constant 0 : i32
    %c0_i32_2 = arith.constant 0 : i32
    return %c0_i32, %c0_i32_0, %c0_i32_1 : i32, i32, i32
  }
  func.func @transform_2(%arg0: i32, %arg1: i32) -> (i32, i32, i32, i32) {
    %c0_i32 = arith.constant 0 : i32
    %c0_i32_0 = arith.constant 0 : i32
    %c0_i32_1 = arith.constant 0 : i32
    return %arg0, %c0_i32, %c0_i32_0, %arg1 : i32, i32, i32, i32
  }
  func.func @transform_3(%arg0: i32, %arg1: i32) -> (i32, i32, i32, i32) {
    %c0_i32 = arith.constant 0 : i32
    %c0_i32_0 = arith.constant 0 : i32
    %c0_i32_1 = arith.constant 0 : i32
    return %arg1, %arg0, %c0_i32, %c0_i32_0 : i32, i32, i32, i32
  }
  func.func @transform_4(%arg0: i32, %arg1: i32) -> (i32, i32, i32, i32) {
    %c0_i32 = arith.constant 0 : i32
    %c0_i32_0 = arith.constant 0 : i32
    %c0_i32_1 = arith.constant 0 : i32
    return %arg1, %arg0, %c0_i32, %c0_i32_0 : i32, i32, i32, i32
  }
}

module attributes {stable_mosaic.version = 11 : i64} {
  func.func @_up_norm_kernel(%arg0: i32, %arg1: i32, %arg2: memref<1x8x4x64xbf16, #tpu.memory_space<vmem>>, %arg3: memref<1x4x1xf32, #tpu.memory_space<vmem>>, %arg4: memref<1x4x1xf32, #tpu.memory_space<vmem>>, %arg5: memref<1x8x4x64xbf16, #tpu.memory_space<vmem>>) attributes {dimension_semantics = [#tpu.dimension_semantics<parallel>, #tpu.dimension_semantics<parallel>], iteration_bounds = array<i64: 2, 1>, scalar_prefetch = 0 : i64, scratch_operands = 0 : i64, tpu.core_type = #tpu.core_type<tc>, window_params = [{transform_indices = @transform_0, window_bounds = array<i64: 1, 8, 4, 64>}, {transform_indices = @transform_1, window_bounds = array<i64: 1, 4, 1>}, {transform_indices = @transform_2, window_bounds = array<i64: 1, 4, 1>}, {transform_indices = @transform_3, window_bounds = array<i64: 1, 8, 4, 64>}]} {
    %c0 = arith.constant 0 : index
    %c0_0 = arith.constant 0 : index
    %c0_1 = arith.constant 0 : index
    %0 = vector.load %arg3[%c0, %c0_0, %c0_1] : memref<1x4x1xf32, #tpu.memory_space<vmem>>, vector<1x4x1xf32>
    %1 = vector.shape_cast %0 : vector<1x4x1xf32> to vector<4x1xf32>
    %c0_2 = arith.constant 0 : index
    %c0_3 = arith.constant 0 : index
    %c0_4 = arith.constant 0 : index
    %2 = vector.load %arg4[%c0_2, %c0_3, %c0_4] : memref<1x4x1xf32, #tpu.memory_space<vmem>>, vector<1x4x1xf32>
    %3 = vector.shape_cast %2 : vector<1x4x1xf32> to vector<4x1xf32>
    %c0_5 = arith.constant 0 : index
    %c0_6 = arith.constant 0 : index
    %c0_7 = arith.constant 0 : index
    %c0_8 = arith.constant 0 : index
    %4 = vector.load %arg2[%c0_5, %c0_6, %c0_7, %c0_8] : memref<1x8x4x64xbf16, #tpu.memory_space<vmem>>, vector<1x1x4x64xbf16>
    %5 = vector.shape_cast %4 : vector<1x1x4x64xbf16> to vector<4x64xbf16>
    %6 = arith.extf %5 : vector<4x64xbf16> to vector<4x64xf32>
    %7 = vector.broadcast %1 : vector<4x1xf32> to vector<4x64xf32>
    %8 = arith.subf %6, %7 : vector<4x64xf32>
    %9 = vector.broadcast %3 : vector<4x1xf32> to vector<4x64xf32>
    %10 = arith.mulf %8, %9 : vector<4x64xf32>
    %11 = arith.truncf %10 : vector<4x64xf32> to vector<4x64xbf16>
    %c0_9 = arith.constant 0 : index
    %c0_10 = arith.constant 0 : index
    %c0_11 = arith.constant 0 : index
    %c0_12 = arith.constant 0 : index
    %12 = vector.load %arg5[%c0_9, %c0_10, %c0_11, %c0_12] : memref<1x8x4x64xbf16, #tpu.memory_space<vmem>>, vector<1x1x4x64xbf16>
    %13 = vector.shape_cast %12 : vector<1x1x4x64xbf16> to vector<4x64xbf16>
    %14 = vector.shape_cast %11 : vector<4x64xbf16> to vector<1x1x4x64xbf16>
    tpu.vector_store %arg5[%c0_9, %c0_10, %c0_11, %c0_12], %14 {strides = array<i32>} : memref<1x8x4x64xbf16, #tpu.memory_space<vmem>>, vector<1x1x4x64xbf16>,
    %c0_13 = arith.constant 0 : index
    %c1 = arith.constant 1 : index
    %c0_14 = arith.constant 0 : index
    %c0_15 = arith.constant 0 : index
    %15 = vector.load %arg2[%c0_13, %c1, %c0_14, %c0_15] : memref<1x8x4x64xbf16, #tpu.memory_space<vmem>>, vector<1x1x4x64xbf16>
    %16 = vector.shape_cast %15 : vector<1x1x4x64xbf16> to vector<4x64xbf16>
    %17 = arith.extf %16 : vector<4x64xbf16> to vector<4x64xf32>
    %18 = vector.broadcast %1 : vector<4x1xf32> to vector<4x64xf32>
    %19 = arith.subf %17, %18 : vector<4x64xf32>
    %20 = vector.broadcast %3 : vector<4x1xf32> to vector<4x64xf32>
    %21 = arith.mulf %19, %20 : vector<4x64xf32>
    %22 = arith.truncf %21 : vector<4x64xf32> to vector<4x64xbf16>
    %c0_16 = arith.constant 0 : index
    %c1_17 = arith.constant 1 : index
    %c0_18 = arith.constant 0 : index
    %c0_19 = arith.constant 0 : index
    %23 = vector.load %arg5[%c0_16, %c1_17, %c0_18, %c0_19] : memref<1x8x4x64xbf16, #tpu.memory_space<vmem>>, vector<1x1x4x64xbf16>
    %24 = vector.shape_cast %23 : vector<1x1x4x64xbf16> to vector<4x64xbf16>
    %25 = vector.shape_cast %22 : vector<4x64xbf16> to vector<1x1x4x64xbf16>
    tpu.vector_store %arg5[%c0_16, %c1_17, %c0_18, %c0_19], %25 {strides = array<i32>} : memref<1x8x4x64xbf16, #tpu.memory_space<vmem>>, vector<1x1x4x64xbf16>,
    %c0_20 = arith.constant 0 : index
    %c2 = arith.constant 2 : index
    %c0_21 = arith.constant 0 : index
    %c0_22 = arith.constant 0 : index
    %26 = vector.load %arg2[%c0_20, %c2, %c0_21, %c0_22] : memref<1x8x4x64xbf16, #tpu.memory_space<vmem>>, vector<1x1x4x64xbf16>
    %27 = vector.shape_cast %26 : vector<1x1x4x64xbf16> to vector<4x64xbf16>
    %28 = arith.extf %27 : vector<4x64xbf16> to vector<4x64xf32>
    %29 = vector.broadcast %1 : vector<4x1xf32> to vector<4x64xf32>
    %30 = arith.subf %28, %29 : vector<4x64xf32>
    %31 = vector.broadcast %3 : vector<4x1xf32> to vector<4x64xf32>
    %32 = arith.mulf %30, %31 : vector<4x64xf32>
    %33 = arith.truncf %32 : vector<4x64xf32> to vector<4x64xbf16>
    %c0_23 = arith.constant 0 : index
    %c2_24 = arith.constant 2 : index
    %c0_25 = arith.constant 0 : index
    %c0_26 = arith.constant 0 : index
    %34 = vector.load %arg5[%c0_23, %c2_24, %c0_25, %c0_26] : memref<1x8x4x64xbf16, #tpu.memory_space<vmem>>, vector<1x1x4x64xbf16>
    %35 = vector.shape_cast %34 : vector<1x1x4x64xbf16> to vector<4x64xbf16>
    %36 = vector.shape_cast %33 : vector<4x64xbf16> to vector<1x1x4x64xbf16>
    tpu.vector_store %arg5[%c0_23, %c2_24, %c0_25, %c0_26], %36 {strides = array<i32>} : memref<1x8x4x64xbf16, #tpu.memory_space<vmem>>, vector<1x1x4x64xbf16>,
    %c0_27 = arith.constant 0 : index
    %c3 = arith.constant 3 : index
    %c0_28 = arith.constant 0 : index
    %c0_29 = arith.constant 0 : index
    %37 = vector.load %arg2[%c0_27, %c3, %c0_28, %c0_29] : memref<1x8x4x64xbf16, #tpu.memory_space<vmem>>, vector<1x1x4x64xbf16>
    %38 = vector.shape_cast %37 : vector<1x1x4x64xbf16> to vector<4x64xbf16>
    %39 = arith.extf %38 : vector<4x64xbf16> to vector<4x64xf32>
    %40 = vector.broadcast %1 : vector<4x1xf32> to vector<4x64xf32>
    %41 = arith.subf %39, %40 : vector<4x64xf32>
    %42 = vector.broadcast %3 : vector<4x1xf32> to vector<4x64xf32>
    %43 = arith.mulf %41, %42 : vector<4x64xf32>
    %44 = arith.truncf %43 : vector<4x64xf32> to vector<4x64xbf16>
    %c0_30 = arith.constant 0 : index
    %c3_31 = arith.constant 3 : index
    %c0_32 = arith.constant 0 : index
    %c0_33 = arith.constant 0 : index
    %45 = vector.load %arg5[%c0_30, %c3_31, %c0_32, %c0_33] : memref<1x8x4x64xbf16, #tpu.memory_space<vmem>>, vector<1x1x4x64xbf16>
    %46 = vector.shape_cast %45 : vector<1x1x4x64xbf16> to vector<4x64xbf16>
    %47 = vector.shape_cast %44 : vector<4x64xbf16> to vector<1x1x4x64xbf16>
    tpu.vector_store %arg5[%c0_30, %c3_31, %c0_32, %c0_33], %47 {strides = array<i32>} : memref<1x8x4x64xbf16, #tpu.memory_space<vmem>>, vector<1x1x4x64xbf16>,
    %c0_34 = arith.constant 0 : index
    %c4 = arith.constant 4 : index
    %c0_35 = arith.constant 0 : index
    %c0_36 = arith.constant 0 : index
    %48 = vector.load %arg2[%c0_34, %c4, %c0_35, %c0_36] : memref<1x8x4x64xbf16, #tpu.memory_space<vmem>>, vector<1x1x4x64xbf16>
    %49 = vector.shape_cast %48 : vector<1x1x4x64xbf16> to vector<4x64xbf16>
    %50 = arith.extf %49 : vector<4x64xbf16> to vector<4x64xf32>
    %51 = vector.broadcast %1 : vector<4x1xf32> to vector<4x64xf32>
    %52 = arith.subf %50, %51 : vector<4x64xf32>
    %53 = vector.broadcast %3 : vector<4x1xf32> to vector<4x64xf32>
    %54 = arith.mulf %52, %53 : vector<4x64xf32>
    %55 = arith.truncf %54 : vector<4x64xf32> to vector<4x64xbf16>
    %c0_37 = arith.constant 0 : index
    %c4_38 = arith.constant 4 : index
    %c0_39 = arith.constant 0 : index
    %c0_40 = arith.constant 0 : index
    %56 = vector.load %arg5[%c0_37, %c4_38, %c0_39, %c0_40] : memref<1x8x4x64xbf16, #tpu.memory_space<vmem>>, vector<1x1x4x64xbf16>
    %57 = vector.shape_cast %56 : vector<1x1x4x64xbf16> to vector<4x64xbf16>
    %58 = vector.shape_cast %55 : vector<4x64xbf16> to vector<1x1x4x64xbf16>
    tpu.vector_store %arg5[%c0_37, %c4_38, %c0_39, %c0_40], %58 {strides = array<i32>} : memref<1x8x4x64xbf16, #tpu.memory_space<vmem>>, vector<1x1x4x64xbf16>,
    %c0_41 = arith.constant 0 : index
    %c5 = arith.constant 5 : index
    %c0_42 = arith.constant 0 : index
    %c0_43 = arith.constant 0 : index
    %59 = vector.load %arg2[%c0_41, %c5, %c0_42, %c0_43] : memref<1x8x4x64xbf16, #tpu.memory_space<vmem>>, vector<1x1x4x64xbf16>
    %60 = vector.shape_cast %59 : vector<1x1x4x64xbf16> to vector<4x64xbf16>
    %61 = arith.extf %60 : vector<4x64xbf16> to vector<4x64xf32>
    %62 = vector.broadcast %1 : vector<4x1xf32> to vector<4x64xf32>
    %63 = arith.subf %61, %62 : vector<4x64xf32>
    %64 = vector.broadcast %3 : vector<4x1xf32> to vector<4x64xf32>
    %65 = arith.mulf %63, %64 : vector<4x64xf32>
    %66 = arith.truncf %65 : vector<4x64xf32> to vector<4x64xbf16>
    %c0_44 = arith.constant 0 : index
    %c5_45 = arith.constant 5 : index
    %c0_46 = arith.constant 0 : index
    %c0_47 = arith.constant 0 : index
    %67 = vector.load %arg5[%c0_44, %c5_45, %c0_46, %c0_47] : memref<1x8x4x64xbf16, #tpu.memory_space<vmem>>, vector<1x1x4x64xbf16>
    %68 = vector.shape_cast %67 : vector<1x1x4x64xbf16> to vector<4x64xbf16>
    %69 = vector.shape_cast %66 : vector<4x64xbf16> to vector<1x1x4x64xbf16>
    tpu.vector_store %arg5[%c0_44, %c5_45, %c0_46, %c0_47], %69 {strides = array<i32>} : memref<1x8x4x64xbf16, #tpu.memory_space<vmem>>, vector<1x1x4x64xbf16>,
    %c0_48 = arith.constant 0 : index
    %c6 = arith.constant 6 : index
    %c0_49 = arith.constant 0 : index
    %c0_50 = arith.constant 0 : index
    %70 = vector.load %arg2[%c0_48, %c6, %c0_49, %c0_50] : memref<1x8x4x64xbf16, #tpu.memory_space<vmem>>, vector<1x1x4x64xbf16>
    %71 = vector.shape_cast %70 : vector<1x1x4x64xbf16> to vector<4x64xbf16>
    %72 = arith.extf %71 : vector<4x64xbf16> to vector<4x64xf32>
    %73 = vector.broadcast %1 : vector<4x1xf32> to vector<4x64xf32>
    %74 = arith.subf %72, %73 : vector<4x64xf32>
    %75 = vector.broadcast %3 : vector<4x1xf32> to vector<4x64xf32>
    %76 = arith.mulf %74, %75 : vector<4x64xf32>
    %77 = arith.truncf %76 : vector<4x64xf32> to vector<4x64xbf16>
    %c0_51 = arith.constant 0 : index
    %c6_52 = arith.constant 6 : index
    %c0_53 = arith.constant 0 : index
    %c0_54 = arith.constant 0 : index
    %78 = vector.load %arg5[%c0_51, %c6_52, %c0_53, %c0_54] : memref<1x8x4x64xbf16, #tpu.memory_space<vmem>>, vector<1x1x4x64xbf16>
    %79 = vector.shape_cast %78 : vector<1x1x4x64xbf16> to vector<4x64xbf16>
    %80 = vector.shape_cast %77 : vector<4x64xbf16> to vector<1x1x4x64xbf16>
    tpu.vector_store %arg5[%c0_51, %c6_52, %c0_53, %c0_54], %80 {strides = array<i32>} : memref<1x8x4x64xbf16, #tpu.memory_space<vmem>>, vector<1x1x4x64xbf16>,
    %c0_55 = arith.constant 0 : index
    %c7 = arith.constant 7 : index
    %c0_56 = arith.constant 0 : index
    %c0_57 = arith.constant 0 : index
    %81 = vector.load %arg2[%c0_55, %c7, %c0_56, %c0_57] : memref<1x8x4x64xbf16, #tpu.memory_space<vmem>>, vector<1x1x4x64xbf16>
    %82 = vector.shape_cast %81 : vector<1x1x4x64xbf16> to vector<4x64xbf16>
    %83 = arith.extf %82 : vector<4x64xbf16> to vector<4x64xf32>
    %84 = vector.broadcast %1 : vector<4x1xf32> to vector<4x64xf32>
    %85 = arith.subf %83, %84 : vector<4x64xf32>
    %86 = vector.broadcast %3 : vector<4x1xf32> to vector<4x64xf32>
    %87 = arith.mulf %85, %86 : vector<4x64xf32>
    %88 = arith.truncf %87 : vector<4x64xf32> to vector<4x64xbf16>
    %c0_58 = arith.constant 0 : index
    %c7_59 = arith.constant 7 : index
    %c0_60 = arith.constant 0 : index
    %c0_61 = arith.constant 0 : index
    %89 = vector.load %arg5[%c0_58, %c7_59, %c0_60, %c0_61] : memref<1x8x4x64xbf16, #tpu.memory_space<vmem>>, vector<1x1x4x64xbf16>
    %90 = vector.shape_cast %89 : vector<1x1x4x64xbf16> to vector<4x64xbf16>
    %91 = vector.shape_cast %88 : vector<4x64xbf16> to vector<1x1x4x64xbf16>
    tpu.vector_store %arg5[%c0_58, %c7_59, %c0_60, %c0_61], %91 {strides = array<i32>} : memref<1x8x4x64xbf16, #tpu.memory_space<vmem>>, vector<1x1x4x64xbf16>,
    return
  }
  func.func @transform_0(%arg0: i32, %arg1: i32) -> (i32, i32, i32, i32) {
    %c0_i32 = arith.constant 0 : i32
    %c0_i32_0 = arith.constant 0 : i32
    %c0_i32_1 = arith.constant 0 : i32
    return %arg0, %c0_i32, %c0_i32_0, %arg1 : i32, i32, i32, i32
  }
  func.func @transform_1(%arg0: i32, %arg1: i32) -> (i32, i32, i32) {
    %c0_i32 = arith.constant 0 : i32
    %c0_i32_0 = arith.constant 0 : i32
    %c0_i32_1 = arith.constant 0 : i32
    return %arg0, %c0_i32, %c0_i32_0 : i32, i32, i32
  }
  func.func @transform_2(%arg0: i32, %arg1: i32) -> (i32, i32, i32) {
    %c0_i32 = arith.constant 0 : i32
    %c0_i32_0 = arith.constant 0 : i32
    %c0_i32_1 = arith.constant 0 : i32
    return %arg0, %c0_i32, %c0_i32_0 : i32, i32, i32
  }
  func.func @transform_3(%arg0: i32, %arg1: i32) -> (i32, i32, i32, i32) {
    %c0_i32 = arith.constant 0 : i32
    %c0_i32_0 = arith.constant 0 : i32
    %c0_i32_1 = arith.constant 0 : i32
    return %arg0, %c0_i32, %c0_i32_0, %arg1 : i32, i32, i32, i32
  }
}

</mosaic_0001>

<llo_original>
// kernel: unet_block_forward.3
$region0: #{unet_block_forward.3}
  #allocation0 [shape = 'u32[]', space=smem, size = 0x4, offset = 0x4, fixed_abs, tag = 'smem constant byte address 0x4 - core index']
  #allocation1 [shape = 'u32[144,128]{1,0:T(1,128)}', space=vmem, size = 0x12000, scoped, tag = 'internal scratch']
  #allocation2 [shape = 'f32[8,64]{1,0:T(8,128)}', space=vmem, size = 0x1000, scoped, tag = 'scratch operand']
  %s0 = inlined_call_operand.vmem [shape: bf16[2,256,64], index: 0, kind: input, shape index: {}]
  %s1 = inlined_call_operand.vmem [shape: bf16[8,256], index: 1, kind: input, shape index: {}]
  %s2 = inlined_call_operand.vmem [shape: f32[8,1], index: 2, kind: input, shape index: {}]
  %s3 = inlined_call_operand.vmem [shape: bf16[2,8,64], index: 3, kind: output, shape index: {}]
  %s4 = sld [smem:[#allocation0]]
  $region53: #{unet_block_forward.3} parent=0
    _
  %s6 = ssub.s32 1, %s4
  %s7 = scalar_select 0, %s6, %s4
  loop: start=0, step=1, limit=4
  $region2: #{unet_block_forward.3} parent=0 // loop_pre_header
    _
  $region3: #{unet_block_forward.3} parent=0 // loop_header
    %s9 = sphi 0, %s13
    %p10 = scmp.ge.s32.totalorder %s9, 4
    %s16 = sphi 0, %s35
    %s17 = sphi 0, %s31
    %s18 = sphi 0, %s27
    %s19 = sphi 0, %s16
    %s20 = sphi 0, %s17
    %s21 = sphi 0, %s18
    %s22 = sphi 0, %s19
    %s23 = sphi 0, %s20
    %s24 = sphi 0, %s21
    %s42 = sphi 0, %s44
    %s45 = sphi 0, %s42
    %s46 = sphi 0, %s45
    %s62 = sphi 0, %s46
    %s68 = sphi 0, %s70
    %s71 = sphi 0, %s68
    %s72 = sphi 0, %s71
    %s88 = sphi 0, %s72
    %s92 = sphi 0, %s92
    %s94 = sphi 0, %s92
    %s95 = sphi 0, %s94
    %s109 = sphi 0, %s95
    %s117 = sphi 0, %s119
    %s120 = sphi 0, %s117
    %s121 = sphi 0, %s120
    %s137 = sphi 0, %s121
  $region4: #{unet_block_forward.3} parent=0 // loop_header_branch
    %12 = sbr.rel (%p10) target = $region8
  $region5: #{unet_block_forward.3} parent=0 // loop_body
    %s14 = ssub.s32 %s9, 1
    %s15 = ssub.s32 %s9, 2
    %s25 = sadd.s32 1, %s18
    %p26 = scmp.ge.s32.totalorder %s25, 1
    %s27 = scalar_select %p26, 0, %s25
    %s28 = sadd.s32 1, %s17
    %s29 = scalar_select %p26, %s28, %s17
    %p30 = scmp.ge.s32.totalorder %s29, 1
    %s31 = scalar_select %p30, 0, %s29
    %s32 = sadd.s32 1, %s16
    %s33 = scalar_select %p30, %s32, %s16
    %p34 = scmp.ge.s32.totalorder %s33, 2
    %s35 = scalar_select %p34, 0, %s33
    %s36 = ssub.s32 %s16, %s35
    %s37 = ssub.s32 %s18, %s27
    %s38 = sor.u32 %s36, %s37
    %s39 = ssub.s32 %s17, %s31
    %s40 = sor.u32 %s38, %s39
    %p41 = scmp.eq.s32.totalorder %s40, 0
    %s43 = sadd.s32 %s42, 1
    %s44 = scalar_select %p41, %s42, %s43
    %p47 = pneg %p41
    %p48 = scmp.eq.s32.totalorder %s9, 1
    %p49 = por %p47, %p48
    %p50 = scmp.ne.s32.totalorder %s42, %s45
    %p51 = scmp.eq.s32.totalorder %s9, 0
    %p52 = por %p50, %p51
    %p53 = scmp.ne.s32.totalorder %s42, %s45
    %p54 = scmp.eq.s32.totalorder %s14, 1
    %p55 = por %p53, %p54
    %p56 = scmp.ne.s32.totalorder %s45, %s46
    %p57 = scmp.eq.s32.totalorder %s14, 0
    %p58 = por %p56, %p57
    %p59 = scmp.ne.s32.totalorder %s45, %s46
    %p60 = scmp.eq.s32.totalorder %s15, 1
    %p61 = por %p59, %p60
    %p63 = scmp.ne.s32.totalorder %s46, %s62
    %p64 = scmp.eq.s32.totalorder %s15, 0
    %p65 = por %p63, %p64
    %s66 = ssub.s32 %s18, %s27
    %p67 = scmp.eq.s32.totalorder %s66, 0
    %s69 = sadd.s32 %s68, 1
    %s70 = scalar_select %p67, %s68, %s69
    %p73 = pneg %p67
    %p74 = scmp.eq.s32.totalorder %s9, 1
    %p75 = por %p73, %p74
    %p76 = scmp.ne.s32.totalorder %s68, %s71
    %p77 = scmp.eq.s32.totalorder %s9, 0
    %p78 = por %p76, %p77
    %p79 = scmp.ne.s32.totalorder %s68, %s71
    %p80 = scmp.eq.s32.totalorder %s14, 1
    %p81 = por %p79, %p80
    %p82 = scmp.ne.s32.totalorder %s71, %s72
    %p83 = scmp.eq.s32.totalorder %s14, 0
    %p84 = por %p82, %p83
    %p85 = scmp.ne.s32.totalorder %s71, %s72
    %p86 = scmp.eq.s32.totalorder %s15, 1
    %p87 = por %p85, %p86
    %p89 = scmp.ne.s32.totalorder %s72, %s88
    %p90 = scmp.eq.s32.totalorder %s15, 0
    %p91 = por %p89, %p90
    %s93 = sadd.s32 %s92, 1
    %p96 = scmp.eq.s32.totalorder %s9, 1
    %p97 = scmp.ne.s32.totalorder %s92, %s94
    %p98 = scmp.eq.s32.totalorder %s9, 0
    %p99 = por %p97, %p98
    %p100 = scmp.ne.s32.totalorder %s92, %s94
    %p101 = scmp.eq.s32.totalorder %s14, 1
    %p102 = por %p100, %p101
    %p103 = scmp.ne.s32.totalorder %s94, %s95
    %p104 = scmp.eq.s32.totalorder %s14, 0
    %p105 = por %p103, %p104
    %p106 = scmp.ne.s32.totalorder %s94, %s95
    %p107 = scmp.eq.s32.totalorder %s15, 1
    %p108 = por %p106, %p107
    %p110 = scmp.ne.s32.totalorder %s95, %s109
    %p111 = scmp.eq.s32.totalorder %s15, 0
    %p112 = por %p110, %p111
    %s113 = ssub.s32 %s16, %s35
    %s114 = ssub.s32 %s17, %s31
    %s115 = sor.u32 %s113, %s114
    %p116 = scmp.eq.s32.totalorder %s115, 0
    %s118 = sadd.s32 %s117, 1
    %s119 = scalar_select %p116, %s117, %s118
    %p122 = pneg %p116
    %p123 = scmp.eq.s32.totalorder %s9, 1
    %p124 = por %p122, %p123
    %p125 = scmp.ne.s32.totalorder %s117, %s120
    %p126 = scmp.eq.s32.totalorder %s9, 0
    %p127 = por %p125, %p126
    %p128 = scmp.ne.s32.totalorder %s117, %s120
    %p129 = scmp.eq.s32.totalorder %s14, 1
    %p130 = por %p128, %p129
    %p131 = scmp.ne.s32.totalorder %s120, %s121
    %p132 = scmp.eq.s32.totalorder %s14, 0
    %p133 = por %p131, %p132
    %p134 = scmp.ne.s32.totalorder %s120, %s121
    %p135 = scmp.eq.s32.totalorder %s15, 1
    %p136 = por %p134, %p135
    %p138 = scmp.ne.s32.totalorder %s121, %s137
    %p139 = scmp.eq.s32.totalorder %s15, 0
    %p140 = por %p138, %p139
    %p141 = scmp.le.s32.totalorder 1, %s9
    %p142 = scmp.lt.s32.totalorder %s9, 3
    %p143 = pnand %p141, %p142
    %p144 = pneg %p143
    // Predicated region
    $region9: #{unet_block_forward.3} parent=5 // pred_check
      _
    $region10: #{unet_block_forward.3} parent=5 // pred_check_branch
      %146 = sbr.rel (%p143) target = $region12
    $region11: #{unet_block_forward.3} parent=5 // pred_region
      %s147 = ssub.s32 %s9, 1
      // Predicated region
      $region13: #{unet_block_forward.3} parent=11 // pred_check
        %p148 = pneg %p84
      $region14: #{unet_block_forward.3} parent=11 // pred_check_branch
        %150 = sbr.rel (%p148) target = $region16
      $region15: #{unet_block_forward.3} parent=11 // pred_region
        %s151 = smul.u32 2, %s21
        %p152 = scmp.lt.s32.totalorder %s151, 1
        %s153 = scalar_select %p152, %s151, 1
        %s154 = smul.addr %s153, 4
        %s155 = scalar_lea.vmem %s1, %s154
        %s156 = smul.u32 2, %s21
      $region16: #{unet_block_forward.3} parent=11 // pred_fallthru
        _
      // Predicated region
      $region17: #{unet_block_forward.3} parent=11 // pred_check
        %p157 = pneg %p105
      $region18: #{unet_block_forward.3} parent=11 // pred_check_branch
        %159 = sbr.rel (%p157) target = $region20
      $region19: #{unet_block_forward.3} parent=11 // pred_region
        _
      $region20: #{unet_block_forward.3} parent=11 // pred_fallthru
        _
    $region12: #{unet_block_forward.3} parent=5 // pred_fallthru
      _
    %p160 = scmp.lt.s32.totalorder %s9, 2
    // Predicated region
    $region21: #{unet_block_forward.3} parent=5 // pred_check
      %p161 = pneg %p160
    $region22: #{unet_block_forward.3} parent=5 // pred_check_branch
      %163 = sbr.rel (%p161) target = $region24
    $region23: #{unet_block_forward.3} parent=5 // pred_region
      // Predicated region
      $region25: #{unet_block_forward.3} parent=23 // pred_check
        %p164 = pneg %p52
      $region26: #{unet_block_forward.3} parent=23 // pred_check_branch
        %166 = sbr.rel (%p164) target = $region28
      $region27: #{unet_block_forward.3} parent=23 // pred_region
        %s167 = smul.u32 32, %s18
        %p168 = scmp.lt.s32.totalorder %s16, 1
        %s169 = scalar_select %p168, %s16, 1
        %p170 = scmp.lt.s32.totalorder %s167, 31
        %s171 = scalar_select %p170, %s167, 31
        %p172 = scmp.lt.s32.totalorder %s17, 0
        %s173 = scalar_select %p172, %s17, 0
        %s174 = sadd.s32 %s173, %s171
        %s175 = smul.addr %s169, 32
        %s176 = sadd.s32 %s174, %s175
        %s177 = smul.addr %s176, 4
        %s178 = scalar_lea.vmem %s0, %s177
        %s179 = smul.u32 32, %s18
      $region28: #{unet_block_forward.3} parent=23 // pred_fallthru
        _
    $region24: #{unet_block_forward.3} parent=5 // pred_fallthru
      _
    %p180 = scmp.le.s32.totalorder 1, %s9
    %p181 = scmp.lt.s32.totalorder %s9, 3
    %p182 = pnand %p180, %p181
    %p183 = pneg %p182
    // Predicated region
    $region29: #{unet_block_forward.3} parent=5 // pred_check
      _
    $region30: #{unet_block_forward.3} parent=5 // pred_check_branch
      %185 = sbr.rel (%p182) target = $region32
    $region31: #{unet_block_forward.3} parent=5 // pred_region
      %s186 = ssub.s32 %s9, 1
      %s187 = smul.u32 32, %s21
      %p188 = scmp.lt.s32.totalorder %s19, 1
      %s189 = scalar_select %p188, %s19, 1
      %p190 = scmp.lt.s32.totalorder %s187, 31
      %s191 = scalar_select %p190, %s187, 31
      %p192 = scmp.lt.s32.totalorder %s20, 0
      %s193 = scalar_select %p192, %s20, 0
      %s194 = sadd.s32 %s193, %s191
      %s195 = smul.addr %s189, 32
      %s196 = sadd.s32 %s194, %s195
      %s197 = smul.addr %s196, 4
      %s198 = scalar_lea.vmem %s0, %s197
      %p199 = pneg %p58
      %p200 = pneg %p55
      %s201 = smul.u32 2, %s21
      %p202 = scmp.lt.s32.totalorder %s201, 1
      %s203 = scalar_select %p202, %s201, 1
      %s204 = smul.addr %s203, 4
      %s205 = scalar_lea.vmem %s1, %s204
      %p206 = pneg %p84
      %p207 = pneg %p81
      %p208 = pneg %p105
      %p209 = pneg %p102
      %p210 = pneg %p133
      %p211 = pneg %p130
      %p212 = scmp.lt.s32.totalorder %s19, 1
      %s213 = scalar_select %p212, %s19, 1
      %p214 = scmp.lt.s32.totalorder %s20, 0
      %s215 = scalar_select %p214, %s20, 0
      %s216 = sadd.s32 %s215, %s213
      %s217 = smul.addr %s216, 4
      %s218 = scalar_lea.vmem %s3, %s217
      %s219 = smul.u32 32, %s21
      %p220 = scmp.lt.s32.totalorder %s19, 1
      %s221 = scalar_select %p220, %s19, 1
      %p222 = scmp.lt.s32.totalorder %s219, 31
      %s223 = scalar_select %p222, %s219, 31
      %p224 = scmp.lt.s32.totalorder %s20, 0
      %s225 = scalar_select %p224, %s20, 0
      %s226 = sadd.s32 %s225, %s223
      %s227 = smul.addr %s221, 32
      %s228 = sadd.s32 %s226, %s227
      %s229 = smul.addr %s228, 4
      %s230 = scalar_lea.vmem %s0, %s229
      %s231 = smul.u32 32, %s21
      %s232 = smul.u32 2, %s21
      %p233 = scmp.lt.s32.totalorder %s232, 1
      %s234 = scalar_select %p233, %s232, 1
      %s235 = smul.addr %s234, 4
      %s236 = scalar_lea.vmem %s1, %s235
      %s237 = smul.u32 2, %s21
      %p238 = scmp.lt.s32.totalorder %s19, 1
      %s239 = scalar_select %p238, %s19, 1
      %p240 = scmp.lt.s32.totalorder %s20, 0
      %s241 = scalar_select %p240, %s20, 0
      %s242 = sadd.s32 %s241, %s239
      %s243 = smul.addr %s242, 4
      %s244 = scalar_lea.vmem %s3, %s243
      %p246 = scmp.eq.s32.totalorder %s21, 0
      // Predicated region
      $region33: #{unet_block_forward.3} parent=31 // pred_check
        %p247 = pneg %p246
      $region34: #{unet_block_forward.3} parent=31 // pred_check_branch
        %249 = sbr.rel (%p247) target = $region36
      $region35: #{unet_block_forward.3} parent=31 // pred_region
        %vm250 = vcmask 523264
        %251 = vst.msk [vmem:[#allocation2] sm:$0xff] %vm250, 0.0
      $region36: #{unet_block_forward.3} parent=31 // pred_fallthru
        _
      %v252 = vld [vmem:[%s230] sm:$0xf]
      %v253 = vld [vmem:[%s230 + $0x4] sm:$0xf]
      %v254 = vld [vmem:[%s230 + $0x8] sm:$0xf]
      %v255 = vld [vmem:[%s230 + $0xc] sm:$0xf]
      %v256 = vld [vmem:[%s230 + $0x10] sm:$0xf]
      %v257 = vld [vmem:[%s230 + $0x14] sm:$0xf]
      %v258 = vld [vmem:[%s230 + $0x18] sm:$0xf]
      %v259 = vld [vmem:[%s230 + $0x1c] sm:$0xf]
      %v260 = vld [vmem:[%s230 + $0x20] sm:$0xf]
      %v261 = vld [vmem:[%s230 + $0x24] sm:$0xf]
      %v262 = vld [vmem:[%s230 + $0x28] sm:$0xf]
      %v263 = vld [vmem:[%s230 + $0x2c] sm:$0xf]
      %v264 = vld [vmem:[%s230 + $0x30] sm:$0xf]
      %v265 = vld [vmem:[%s230 + $0x34] sm:$0xf]
      %v266 = vld [vmem:[%s230 + $0x38] sm:$0xf]
      %v267 = vld [vmem:[%s230 + $0x3c] sm:$0xf]
      %v268 = vld [vmem:[%s230 + $0x40] sm:$0xf]
      %v269 = vld [vmem:[%s230 + $0x44] sm:$0xf]
      %v270 = vld [vmem:[%s230 + $0x48] sm:$0xf]
      %v271 = vld [vmem:[%s230 + $0x4c] sm:$0xf]
      %v272 = vld [vmem:[%s230 + $0x50] sm:$0xf]
      %v273 = vld [vmem:[%s230 + $0x54] sm:$0xf]
      %v274 = vld [vmem:[%s230 + $0x58] sm:$0xf]
      %v275 = vld [vmem:[%s230 + $0x5c] sm:$0xf]
      %v276 = vld [vmem:[%s230 + $0x60] sm:$0xf]
      %v277 = vld [vmem:[%s230 + $0x64] sm:$0xf]
      %v278 = vld [vmem:[%s230 + $0x68] sm:$0xf]
      %v279 = vld [vmem:[%s230 + $0x6c] sm:$0xf]
      %v280 = vld [vmem:[%s230 + $0x70] sm:$0xf]
      %v281 = vld [vmem:[%s230 + $0x74] sm:$0xf]
      %v282 = vld [vmem:[%s230 + $0x78] sm:$0xf]
      %v283 = vld [vmem:[%s230 + $0x7c] sm:$0xf]
      %v284 = vld [vmem:[%s236] sm:$0xff]
      %v285 = vld [vmem:[#allocation2] sm:$0xff]
      %v287 = vunpack.c.l.b16 %v284
      %v288 = vunpack.c.h.b16 %v284
      %v289 = vpack.c.b16 %v287, %v287
      %v290 = vpack.c.b16 %v288, %v288
      %v325 = vunpack.c.l.b16 %v252
      %v326 = vunpack.c.l.b16 %v253
      %v327 = vunpack.c.l.b16 %v254
      %v328 = vunpack.c.l.b16 %v255
      %v329 = vunpack.c.l.b16 %v256
      %v330 = vunpack.c.l.b16 %v257
      %v331 = vunpack.c.l.b16 %v258
      %v332 = vunpack.c.l.b16 %v259
      %v333 = vunpack.c.l.b16 %v260
      %v334 = vunpack.c.l.b16 %v261
      %v335 = vunpack.c.l.b16 %v262
      %v336 = vunpack.c.l.b16 %v263
      %v337 = vunpack.c.l.b16 %v264
      %v338 = vunpack.c.l.b16 %v265
      %v339 = vunpack.c.l.b16 %v266
      %v340 = vunpack.c.l.b16 %v267
      %v341 = vunpack.c.l.b16 %v268
      %v342 = vunpack.c.l.b16 %v269
      %v343 = vunpack.c.l.b16 %v270
      %v344 = vunpack.c.l.b16 %v271
      %v345 = vunpack.c.l.b16 %v272
      %v346 = vunpack.c.l.b16 %v273
      %v347 = vunpack.c.l.b16 %v274
      %v348 = vunpack.c.l.b16 %v275
      %v349 = vunpack.c.l.b16 %v276
      %v350 = vunpack.c.l.b16 %v277
      %v351 = vunpack.c.l.b16 %v278
      %v352 = vunpack.c.l.b16 %v279
      %v353 = vunpack.c.l.b16 %v280
      %v354 = vunpack.c.l.b16 %v281
      %v355 = vunpack.c.l.b16 %v282
      %v356 = vunpack.c.l.b16 %v283
      %v357 = vpack.c.b16 %v326, %v325
      %v358 = vpack.c.b16 %v328, %v327
      %v359 = vpack.c.b16 %v330, %v329
      %v360 = vpack.c.b16 %v332, %v331
      %v361 = vpack.c.b16 %v334, %v333
      %v362 = vpack.c.b16 %v336, %v335
      %v363 = vpack.c.b16 %v338, %v337
      %v364 = vpack.c.b16 %v340, %v339
      %v365 = vpack.c.b16 %v342, %v341
      %v366 = vpack.c.b16 %v344, %v343
      %v367 = vpack.c.b16 %v346, %v345
      %v368 = vpack.c.b16 %v348, %v347
      %v369 = vpack.c.b16 %v350, %v349
      %v370 = vpack.c.b16 %v352, %v351
      %v371 = vpack.c.b16 %v354, %v353
      %v372 = vpack.c.b16 %v356, %v355
      %389 = vmatprep.subr.bf16.mxu0 0
      %390 = vmatpush1.bf16.msra.mxu0 %v357
      %391 = vmatprep.subr.bf16.mxu0 0
      %392 = vmatpush1.bf16.msra.mxu0 %v358
      %393 = vmatprep.subr.bf16.mxu0 0
      %394 = vmatpush1.bf16.msra.mxu0 %v359
      %395 = vmatprep.subr.bf16.mxu0 0
      %396 = vmatpush1.bf16.msra.mxu0 %v360
      %397 = vmatprep.subr.bf16.mxu0 0
      %398 = vmatpush1.bf16.msra.mxu0 %v361
      %399 = vmatprep.subr.bf16.mxu0 0
      %400 = vmatpush1.bf16.msra.mxu0 %v362
      %401 = vmatprep.subr.bf16.mxu0 0
      %402 = vmatpush1.bf16.msra.mxu0 %v363
      %403 = vmatprep.subr.bf16.mxu0 0
      %404 = vmatpush1.bf16.msra.mxu0 %v364
      %405 = vmatprep.subr.bf16.mxu0 0
      %406 = vmatpush1.bf16.msra.mxu0 %v365
      %407 = vmatprep.subr.bf16.mxu0 0
      %408 = vmatpush1.bf16.msra.mxu0 %v366
      %409 = vmatprep.subr.bf16.mxu0 0
      %410 = vmatpush1.bf16.msra.mxu0 %v367
      %411 = vmatprep.subr.bf16.mxu0 0
      %412 = vmatpush1.bf16.msra.mxu0 %v368
      %413 = vmatprep.subr.bf16.mxu0 0
      %414 = vmatpush1.bf16.msra.mxu0 %v369
      %415 = vmatprep.subr.bf16.mxu0 0
      %416 = vmatpush1.bf16.msra.mxu0 %v370
      %417 = vmatprep.subr.bf16.mxu0 0
      %418 = vmatpush1.bf16.msra.mxu0 %v371
      %419 = vmatprep.subr.bf16.mxu0 0
      %420 = vmatpush1.bf16.msra.mxu0 %v372
      %421 = vmatprep.mubr.bf16.mxu0 %v290
      %422 = vmatmul.mubr.bf16.gmra.mrb[0].mxu0 %v289
      %v423 = vpop.f32.mrb[0].mxu0
      %v424 = vadd.f32 0.0, %v423
      %v425 = vpop.f32.mrb[0].mxu0
      %v426 = vpop.f32.mrb[0].mxu0
      %v427 = vpop.f32.mrb[0].mxu0
      %428 = vdwg.mxu0
      %v429 = vadd.f32 %v285, %v424
      %vm430 = vcmask 523264
      %431 = vst.msk [vmem:[#allocation2] sm:$0xff] %vm430, %v429
      // Predicated region
      $region37: #{unet_block_forward.3} parent=31 // pred_check
        %p432 = pneg %p246
      $region38: #{unet_block_forward.3} parent=31 // pred_check_branch
        %434 = sbr.rel (%p432) target = $region40
      $region39: #{unet_block_forward.3} parent=31 // pred_region
        %v435 = vld [vmem:[#allocation2] sm:$0xff]
        %v436 = vld [vmem:[%s2] sm:$0xff]
        %438 = vset.pattern.permute.xlu0 0
        %439 = vperm.xlu0 %438, %v436
        %v440 = vpop.permute.xlu0 %439
        %v442 = vadd.f32 %v435, %v440
        %v443 = vmax.f32 %v442, 0.0
        %v444 = vpack.c.bf16 %v443, %v443
        %vm445 = vcmask 519168
        %446 = vst.msk [vmem:[%s244] sm:$0xf] %vm445, %v444
      $region40: #{unet_block_forward.3} parent=31 // pred_fallthru
        _
      %p447 = scmp.lt.s32.totalorder %s19, 1
      %s448 = scalar_select %p447, %s19, 1
      %p449 = scmp.lt.s32.totalorder %s20, 0
      %s450 = scalar_select %p449, %s20, 0
      %s451 = sadd.s32 %s450, %s448
      %s452 = smul.addr %s451, 4
      %s453 = scalar_lea.vmem %s3, %s452
      // Predicated region
      $region41: #{unet_block_forward.3} parent=31 // pred_check
        %p454 = pneg %p130
      $region42: #{unet_block_forward.3} parent=31 // pred_check_branch
        %456 = sbr.rel (%p454) target = $region44
      $region43: #{unet_block_forward.3} parent=31 // pred_region
        _
      $region44: #{unet_block_forward.3} parent=31 // pred_fallthru
        _
    $region32: #{unet_block_forward.3} parent=5 // pred_fallthru
      _
    %p457 = scmp.le.s32.totalorder 2, %s9
    // Predicated region
    $region45: #{unet_block_forward.3} parent=5 // pred_check
      %p458 = pneg %p457
    $region46: #{unet_block_forward.3} parent=5 // pred_check_branch
      %460 = sbr.rel (%p458) target = $region48
    $region47: #{unet_block_forward.3} parent=5 // pred_region
      %s461 = ssub.s32 %s9, 2
      // Predicated region
      $region49: #{unet_block_forward.3} parent=47 // pred_check
        %p462 = pneg %p136
      $region50: #{unet_block_forward.3} parent=47 // pred_check_branch
        %464 = sbr.rel (%p462) target = $region52
      $region51: #{unet_block_forward.3} parent=47 // pred_region
        %p465 = scmp.lt.s32.totalorder %s22, 1
        %s466 = scalar_select %p465, %s22, 1
        %p467 = scmp.lt.s32.totalorder %s23, 0
        %s468 = scalar_select %p467, %s23, 0
        %s469 = sadd.s32 %s468, %s466
        %s470 = smul.addr %s469, 4
        %s471 = scalar_lea.vmem %s3, %s470
      $region52: #{unet_block_forward.3} parent=47 // pred_fallthru
        _
    $region48: #{unet_block_forward.3} parent=5 // pred_fallthru
      _
  $region6: #{unet_block_forward.3} parent=0 // loop_footer
    %s13 = sadd.s32 1, %s9
  $region7: #{unet_block_forward.3} parent=0 // loop_footer_branch
    %8 = sbr.rel target = $region3
  $region8: #{unet_block_forward.3} parent=0 // loop_exit
    _

// kernel: unet_block_forward.5
$region0: #{unet_block_forward.5}
  #allocation0 [shape = 'u32[]', space=smem, size = 0x4, offset = 0x4, fixed_abs, tag = 'smem constant byte address 0x4 - core index']
  #allocation1 [shape = 'u32[144,128]{1,0:T(1,128)}', space=vmem, size = 0x12000, scoped, tag = 'internal scratch']
  %s0 = inlined_call_operand.vmem [shape: bf16[2,8,4,64], index: 0, kind: input, shape index: {}]
  %s1 = inlined_call_operand.vmem [shape: f32[2,4,1], index: 1, kind: input, shape index: {}]
  %s2 = inlined_call_operand.vmem [shape: f32[2,4,1], index: 2, kind: input, shape index: {}]
  %s3 = inlined_call_operand.vmem [shape: bf16[2,8,4,64], index: 3, kind: output, shape index: {}]
  %s4 = sld [smem:[#allocation0]]
  $region45: #{unet_block_forward.5} parent=0
    _
  %s6 = ssub.s32 1, %s4
  %s7 = scalar_select 0, %s6, %s4
  loop: start=0, step=1, limit=4
  $region2: #{unet_block_forward.5} parent=0 // loop_pre_header
    _
  $region3: #{unet_block_forward.5} parent=0 // loop_header
    %s9 = sphi 0, %s13
    %p10 = scmp.ge.s32.totalorder %s9, 4
    %s16 = sphi 0, %s28
    %s17 = sphi 0, %s24
    %s18 = sphi 0, %s16
    %s19 = sphi 0, %s17
    %s20 = sphi 0, %s18
    %s21 = sphi 0, %s19
    %s33 = sphi 0, %s35
    %s36 = sphi 0, %s33
    %s37 = sphi 0, %s36
    %s53 = sphi 0, %s37
    %s59 = sphi 0, %s61
    %s62 = sphi 0, %s59
    %s63 = sphi 0, %s62
    %s79 = sphi 0, %s63
    %s85 = sphi 0, %s87
    %s88 = sphi 0, %s85
    %s89 = sphi 0, %s88
    %s105 = sphi 0, %s89
    %s113 = sphi 0, %s115
    %s116 = sphi 0, %s113
    %s117 = sphi 0, %s116
    %s133 = sphi 0, %s117
  $region4: #{unet_block_forward.5} parent=0 // loop_header_branch
    %12 = sbr.rel (%p10) target = $region8
  $region5: #{unet_block_forward.5} parent=0 // loop_body
    %s14 = ssub.s32 %s9, 1
    %s15 = ssub.s32 %s9, 2
    %s22 = sadd.s32 1, %s17
    %p23 = scmp.ge.s32.totalorder %s22, 1
    %s24 = scalar_select %p23, 0, %s22
    %s25 = sadd.s32 1, %s16
    %s26 = scalar_select %p23, %s25, %s16
    %p27 = scmp.ge.s32.totalorder %s26, 2
    %s28 = scalar_select %p27, 0, %s26
    %s29 = ssub.s32 %s16, %s28
    %s30 = ssub.s32 %s17, %s24
    %s31 = sor.u32 %s29, %s30
    %p32 = scmp.eq.s32.totalorder %s31, 0
    %s34 = sadd.s32 %s33, 1
    %s35 = scalar_select %p32, %s33, %s34
    %p38 = pneg %p32
    %p39 = scmp.eq.s32.totalorder %s9, 1
    %p40 = por %p38, %p39
    %p41 = scmp.ne.s32.totalorder %s33, %s36
    %p42 = scmp.eq.s32.totalorder %s9, 0
    %p43 = por %p41, %p42
    %p44 = scmp.ne.s32.totalorder %s33, %s36
    %p45 = scmp.eq.s32.totalorder %s14, 1
    %p46 = por %p44, %p45
    %p47 = scmp.ne.s32.totalorder %s36, %s37
    %p48 = scmp.eq.s32.totalorder %s14, 0
    %p49 = por %p47, %p48
    %p50 = scmp.ne.s32.totalorder %s36, %s37
    %p51 = scmp.eq.s32.totalorder %s15, 1
    %p52 = por %p50, %p51
    %p54 = scmp.ne.s32.totalorder %s37, %s53
    %p55 = scmp.eq.s32.totalorder %s15, 0
    %p56 = por %p54, %p55
    %s57 = ssub.s32 %s16, %s28
    %p58 = scmp.eq.s32.totalorder %s57, 0
    %s60 = sadd.s32 %s59, 1
    %s61 = scalar_select %p58, %s59, %s60
    %p64 = pneg %p58
    %p65 = scmp.eq.s32.totalorder %s9, 1
    %p66 = por %p64, %p65
    %p67 = scmp.ne.s32.totalorder %s59, %s62
    %p68 = scmp.eq.s32.totalorder %s9, 0
    %p69 = por %p67, %p68
    %p70 = scmp.ne.s32.totalorder %s59, %s62
    %p71 = scmp.eq.s32.totalorder %s14, 1
    %p72 = por %p70, %p71
    %p73 = scmp.ne.s32.totalorder %s62, %s63
    %p74 = scmp.eq.s32.totalorder %s14, 0
    %p75 = por %p73, %p74
    %p76 = scmp.ne.s32.totalorder %s62, %s63
    %p77 = scmp.eq.s32.totalorder %s15, 1
    %p78 = por %p76, %p77
    %p80 = scmp.ne.s32.totalorder %s63, %s79
    %p81 = scmp.eq.s32.totalorder %s15, 0
    %p82 = por %p80, %p81
    %s83 = ssub.s32 %s16, %s28
    %p84 = scmp.eq.s32.totalorder %s83, 0
    %s86 = sadd.s32 %s85, 1
    %s87 = scalar_select %p84, %s85, %s86
    %p90 = pneg %p84
    %p91 = scmp.eq.s32.totalorder %s9, 1
    %p92 = por %p90, %p91
    %p93 = scmp.ne.s32.totalorder %s85, %s88
    %p94 = scmp.eq.s32.totalorder %s9, 0
    %p95 = por %p93, %p94
    %p96 = scmp.ne.s32.totalorder %s85, %s88
    %p97 = scmp.eq.s32.totalorder %s14, 1
    %p98 = por %p96, %p97
    %p99 = scmp.ne.s32.totalorder %s88, %s89
    %p100 = scmp.eq.s32.totalorder %s14, 0
    %p101 = por %p99, %p100
    %p102 = scmp.ne.s32.totalorder %s88, %s89
    %p103 = scmp.eq.s32.totalorder %s15, 1
    %p104 = por %p102, %p103
    %p106 = scmp.ne.s32.totalorder %s89, %s105
    %p107 = scmp.eq.s32.totalorder %s15, 0
    %p108 = por %p106, %p107
    %s109 = ssub.s32 %s16, %s28
    %s110 = ssub.s32 %s17, %s24
    %s111 = sor.u32 %s109, %s110
    %p112 = scmp.eq.s32.totalorder %s111, 0
    %s114 = sadd.s32 %s113, 1
    %s115 = scalar_select %p112, %s113, %s114
    %p118 = pneg %p112
    %p119 = scmp.eq.s32.totalorder %s9, 1
    %p120 = por %p118, %p119
    %p121 = scmp.ne.s32.totalorder %s113, %s116
    %p122 = scmp.eq.s32.totalorder %s9, 0
    %p123 = por %p121, %p122
    %p124 = scmp.ne.s32.totalorder %s113, %s116
    %p125 = scmp.eq.s32.totalorder %s14, 1
    %p126 = por %p124, %p125
    %p127 = scmp.ne.s32.totalorder %s116, %s117
    %p128 = scmp.eq.s32.totalorder %s14, 0
    %p129 = por %p127, %p128
    %p130 = scmp.ne.s32.totalorder %s116, %s117
    %p131 = scmp.eq.s32.totalorder %s15, 1
    %p132 = por %p130, %p131
    %p134 = scmp.ne.s32.totalorder %s117, %s133
    %p135 = scmp.eq.s32.totalorder %s15, 0
    %p136 = por %p134, %p135
    %p137 = scmp.le.s32.totalorder 1, %s9
    %p138 = scmp.lt.s32.totalorder %s9, 3
    %p139 = pnand %p137, %p138
    %p140 = pneg %p139
    // Predicated region
    $region9: #{unet_block_forward.5} parent=5 // pred_check
      _
    $region10: #{unet_block_forward.5} parent=5 // pred_check_branch
      %142 = sbr.rel (%p139) target = $region12
    $region11: #{unet_block_forward.5} parent=5 // pred_region
      %s143 = ssub.s32 %s9, 1
    $region12: #{unet_block_forward.5} parent=5 // pred_fallthru
      _
    %p144 = scmp.lt.s32.totalorder %s9, 2
    // Predicated region
    $region13: #{unet_block_forward.5} parent=5 // pred_check
      %p145 = pneg %p144
    $region14: #{unet_block_forward.5} parent=5 // pred_check_branch
      %147 = sbr.rel (%p145) target = $region16
    $region15: #{unet_block_forward.5} parent=5 // pred_region
      // Predicated region
      $region17: #{unet_block_forward.5} parent=15 // pred_check
        %p148 = pneg %p43
      $region18: #{unet_block_forward.5} parent=15 // pred_check_branch
        %150 = sbr.rel (%p148) target = $region20
      $region19: #{unet_block_forward.5} parent=15 // pred_region
        %p151 = scmp.lt.s32.totalorder %s16, 1
        %s152 = scalar_select %p151, %s16, 1
        %p153 = scmp.lt.s32.totalorder %s17, 0
        %s154 = scalar_select %p153, %s17, 0
        %s155 = smul.addr %s152, 8
        %s156 = sadd.s32 %s154, %s155
        %s157 = smul.addr %s156, 2
        %s158 = scalar_lea.vmem %s0, %s157
      $region20: #{unet_block_forward.5} parent=15 // pred_fallthru
        _
      // Predicated region
      $region21: #{unet_block_forward.5} parent=15 // pred_check
        %p159 = pneg %p69
      $region22: #{unet_block_forward.5} parent=15 // pred_check_branch
        %161 = sbr.rel (%p159) target = $region24
      $region23: #{unet_block_forward.5} parent=15 // pred_region
        %p162 = scmp.lt.s32.totalorder %s16, 1
        %s163 = scalar_select %p162, %s16, 1
        %s164 = smul.addr %s163, 4
        %s165 = scalar_lea.vmem %s1, %s164
      $region24: #{unet_block_forward.5} parent=15 // pred_fallthru
        _
      // Predicated region
      $region25: #{unet_block_forward.5} parent=15 // pred_check
        %p166 = pneg %p95
      $region26: #{unet_block_forward.5} parent=15 // pred_check_branch
        %168 = sbr.rel (%p166) target = $region28
      $region27: #{unet_block_forward.5} parent=15 // pred_region
        %p169 = scmp.lt.s32.totalorder %s16, 1
        %s170 = scalar_select %p169, %s16, 1
        %s171 = smul.addr %s170, 4
        %s172 = scalar_lea.vmem %s2, %s171
      $region28: #{unet_block_forward.5} parent=15 // pred_fallthru
        _
    $region16: #{unet_block_forward.5} parent=5 // pred_fallthru
      _
    %p173 = scmp.le.s32.totalorder 1, %s9
    %p174 = scmp.lt.s32.totalorder %s9, 3
    %p175 = pnand %p173, %p174
    %p176 = pneg %p175
    // Predicated region
    $region29: #{unet_block_forward.5} parent=5 // pred_check
      _
    $region30: #{unet_block_forward.5} parent=5 // pred_check_branch
      %178 = sbr.rel (%p175) target = $region32
    $region31: #{unet_block_forward.5} parent=5 // pred_region
      %s179 = ssub.s32 %s9, 1
      %p180 = scmp.lt.s32.totalorder %s18, 1
      %s181 = scalar_select %p180, %s18, 1
      %p182 = scmp.lt.s32.totalorder %s19, 0
      %s183 = scalar_select %p182, %s19, 0
      %s184 = smul.addr %s181, 8
      %s185 = sadd.s32 %s183, %s184
      %s186 = smul.addr %s185, 2
      %s187 = scalar_lea.vmem %s0, %s186
      %p188 = pneg %p49
      %p189 = pneg %p46
      %p190 = scmp.lt.s32.totalorder %s18, 1
      %s191 = scalar_select %p190, %s18, 1
      %s192 = smul.addr %s191, 4
      %s193 = scalar_lea.vmem %s1, %s192
      %p194 = pneg %p75
      %p195 = pneg %p72
      %p196 = scmp.lt.s32.totalorder %s18, 1
      %s197 = scalar_select %p196, %s18, 1
      %s198 = smul.addr %s197, 4
      %s199 = scalar_lea.vmem %s2, %s198
      %p200 = pneg %p101
      %p201 = pneg %p98
      %p202 = pneg %p129
      %p203 = pneg %p126
      %p204 = scmp.lt.s32.totalorder %s18, 1
      %s205 = scalar_select %p204, %s18, 1
      %p206 = scmp.lt.s32.totalorder %s19, 0
      %s207 = scalar_select %p206, %s19, 0
      %s208 = smul.addr %s205, 8
      %s209 = sadd.s32 %s207, %s208
      %s210 = smul.addr %s209, 2
      %s211 = scalar_lea.vmem %s3, %s210
      %p212 = scmp.lt.s32.totalorder %s18, 1
      %s213 = scalar_select %p212, %s18, 1
      %p214 = scmp.lt.s32.totalorder %s19, 0
      %s215 = scalar_select %p214, %s19, 0
      %s216 = smul.addr %s213, 8
      %s217 = sadd.s32 %s215, %s216
      %s218 = smul.addr %s217, 2
      %s219 = scalar_lea.vmem %s0, %s218
      %p220 = scmp.lt.s32.totalorder %s18, 1
      %s221 = scalar_select %p220, %s18, 1
      %s222 = smul.addr %s221, 4
      %s223 = scalar_lea.vmem %s1, %s222
      %p224 = scmp.lt.s32.totalorder %s18, 1
      %s225 = scalar_select %p224, %s18, 1
      %s226 = smul.addr %s225, 4
      %s227 = scalar_lea.vmem %s2, %s226
      %p228 = scmp.lt.s32.totalorder %s18, 1
      %s229 = scalar_select %p228, %s18, 1
      %p230 = scmp.lt.s32.totalorder %s19, 0
      %s231 = scalar_select %p230, %s19, 0
      %s232 = smul.addr %s229, 8
      %s233 = sadd.s32 %s231, %s232
      %s234 = smul.addr %s233, 2
      %s235 = scalar_lea.vmem %s3, %s234
      %v236 = vld [vmem:[%s223] sm:$0xf]
      %v237 = vld [vmem:[%s227] sm:$0xf]
      %v238 = vld [vmem:[%s219] sm:$0x3]
      %v239 = vunpack.c.l.bf16 %v238
      %241 = vset.pattern.permute.xlu0 0
      %242 = vperm.xlu0 %241, %v236
      %v243 = vpop.permute.xlu0 %242
      %v245 = vsub.f32 %v239, %v243
      %247 = vset.pattern.permute.xlu0 0
      %248 = vperm.xlu0 %247, %v237
      %v249 = vpop.permute.xlu0 %248
      %v251 = vmul.f32 %v245, %v249
      %v252 = vpack.c.bf16 %v251, %v251
      %vm253 = vcmask 517120
      %254 = vst.msk [vmem:[%s235] sm:$0x3] %vm253, %v252
      %s255 = scalar_lea.vmem %s219, 2
      %v256 = vld [vmem:[%s255] sm:$0x3]
      %v257 = vunpack.c.l.bf16 %v256
      %v258 = vsub.f32 %v257, %v243
      %v259 = vmul.f32 %v258, %v249
      %v260 = vpack.c.bf16 %v259, %v259
      %s261 = scalar_lea.vmem %s235, 2
      %262 = vst.msk [vmem:[%s261] sm:$0x3] %vm253, %v260
      %s263 = scalar_lea.vmem %s219, 4
      %v264 = vld [vmem:[%s263] sm:$0x3]
      %v265 = vunpack.c.l.bf16 %v264
      %v266 = vsub.f32 %v265, %v243
      %v267 = vmul.f32 %v266, %v249
      %v268 = vpack.c.bf16 %v267, %v267
      %s269 = scalar_lea.vmem %s235, 4
      %270 = vst.msk [vmem:[%s269] sm:$0x3] %vm253, %v268
      %s271 = scalar_lea.vmem %s219, 6
      %v272 = vld [vmem:[%s271] sm:$0x3]
      %v273 = vunpack.c.l.bf16 %v272
      %v274 = vsub.f32 %v273, %v243
      %v275 = vmul.f32 %v274, %v249
      %v276 = vpack.c.bf16 %v275, %v275
      %s277 = scalar_lea.vmem %s235, 6
      %278 = vst.msk [vmem:[%s277] sm:$0x3] %vm253, %v276
      %s279 = scalar_lea.vmem %s219, 8
      %v280 = vld [vmem:[%s279] sm:$0x3]
      %v281 = vunpack.c.l.bf16 %v280
      %v282 = vsub.f32 %v281, %v243
      %v283 = vmul.f32 %v282, %v249
      %v284 = vpack.c.bf16 %v283, %v283
      %s285 = scalar_lea.vmem %s235, 8
      %286 = vst.msk [vmem:[%s285] sm:$0x3] %vm253, %v284
      %s287 = scalar_lea.vmem %s219, 10
      %v288 = vld [vmem:[%s287] sm:$0x3]
      %v289 = vunpack.c.l.bf16 %v288
      %v290 = vsub.f32 %v289, %v243
      %v291 = vmul.f32 %v290, %v249
      %v292 = vpack.c.bf16 %v291, %v291
      %s293 = scalar_lea.vmem %s235, 10
      %294 = vst.msk [vmem:[%s293] sm:$0x3] %vm253, %v292
      %s295 = scalar_lea.vmem %s219, 12
      %v296 = vld [vmem:[%s295] sm:$0x3]
      %v297 = vunpack.c.l.bf16 %v296
      %v298 = vsub.f32 %v297, %v243
      %v299 = vmul.f32 %v298, %v249
      %v300 = vpack.c.bf16 %v299, %v299
      %s301 = scalar_lea.vmem %s235, 12
      %302 = vst.msk [vmem:[%s301] sm:$0x3] %vm253, %v300
      %s303 = scalar_lea.vmem %s219, 14
      %v304 = vld [vmem:[%s303] sm:$0x3]
      %v305 = vunpack.c.l.bf16 %v304
      %v306 = vsub.f32 %v305, %v243
      %v307 = vmul.f32 %v306, %v249
      %v308 = vpack.c.bf16 %v307, %v307
      %s309 = scalar_lea.vmem %s235, 14
      %310 = vst.msk [vmem:[%s309] sm:$0x3] %vm253, %v308
      %p311 = scmp.lt.s32.totalorder %s18, 1
      %s312 = scalar_select %p311, %s18, 1
      %p313 = scmp.lt.s32.totalorder %s19, 0
      %s314 = scalar_select %p313, %s19, 0
      %s315 = smul.addr %s312, 8
      %s316 = sadd.s32 %s314, %s315
      %s317 = smul.addr %s316, 2
      %s318 = scalar_lea.vmem %s3, %s317
      // Predicated region
      $region33: #{unet_block_forward.5} parent=31 // pred_check
        %p319 = pneg %p126
      $region34: #{unet_block_forward.5} parent=31 // pred_check_branch
        %321 = sbr.rel (%p319) target = $region36
      $region35: #{unet_block_forward.5} parent=31 // pred_region
        _
      $region36: #{unet_block_forward.5} parent=31 // pred_fallthru
        _
    $region32: #{unet_block_forward.5} parent=5 // pred_fallthru
      _
    %p322 = scmp.le.s32.totalorder 2, %s9
    // Predicated region
    $region37: #{unet_block_forward.5} parent=5 // pred_check
      %p323 = pneg %p322
    $region38: #{unet_block_forward.5} parent=5 // pred_check_branch
      %325 = sbr.rel (%p323) target = $region40
    $region39: #{unet_block_forward.5} parent=5 // pred_region
      %s326 = ssub.s32 %s9, 2
      // Predicated region
      $region41: #{unet_block_forward.5} parent=39 // pred_check
        %p327 = pneg %p132
      $region42: #{unet_block_forward.5} parent=39 // pred_check_branch
        %329 = sbr.rel (%p327) target = $region44
      $region43: #{unet_block_forward.5} parent=39 // pred_region
        %p330 = scmp.lt.s32.totalorder %s20, 1
        %s331 = scalar_select %p330, %s20, 1
        %p332 = scmp.lt.s32.totalorder %s21, 0
        %s333 = scalar_select %p332, %s21, 0
        %s334 = smul.addr %s331, 8
        %s335 = sadd.s32 %s333, %s334
        %s336 = smul.addr %s335, 2
        %s337 = scalar_lea.vmem %s3, %s336
      $region44: #{unet_block_forward.5} parent=39 // pred_fallthru
        _
    $region40: #{unet_block_forward.5} parent=5 // pred_fallthru
      _
  $region6: #{unet_block_forward.5} parent=0 // loop_footer
    %s13 = sadd.s32 1, %s9
  $region7: #{unet_block_forward.5} parent=0 // loop_footer_branch
    %8 = sbr.rel target = $region3
  $region8: #{unet_block_forward.5} parent=0 // loop_exit
    _

// kernel: unet_block_forward.4
$region0: #{unet_block_forward.4}
  #allocation0 [shape = 'u32[]', space=smem, size = 0x4, offset = 0x4, fixed_abs, tag = 'smem constant byte address 0x4 - core index']
  #allocation1 [shape = 'u32[144,128]{1,0:T(1,128)}', space=vmem, size = 0x12000, scoped, tag = 'internal scratch']
  %s0 = inlined_call_operand.vmem [shape: bf16[2,8,64,64], index: 0, kind: input, shape index: {}]
  %s1 = inlined_call_operand.vmem [shape: bf16[8,4,64], index: 1, kind: input, shape index: {}]
  %s2 = inlined_call_operand.vmem [shape: bf16[2,8,4,64], index: 2, kind: output, shape index: {0}]
  %s3 = inlined_call_operand.vmem [shape: f32[1,2,4,1], index: 3, kind: output, shape index: {1}]
  %s4 = inlined_call_operand.vmem [shape: f32[1,2,4,1], index: 4, kind: output, shape index: {2}]
  %5 = xla_tuple %s2, %s3, %s4
  %s6 = sld [smem:[#allocation0]]
  $region57: #{unet_block_forward.4} parent=0
    _
  %s8 = ssub.s32 1, %s6
  %s9 = scalar_select 0, %s8, %s6
  loop: start=0, step=1, limit=4
  $region2: #{unet_block_forward.4} parent=0 // loop_pre_header
    _
  $region3: #{unet_block_forward.4} parent=0 // loop_header
    %s11 = sphi 0, %s15
    %p12 = scmp.ge.s32.totalorder %s11, 4
    %s18 = sphi 0, %s30
    %s19 = sphi 0, %s26
    %s20 = sphi 0, %s18
    %s21 = sphi 0, %s19
    %s22 = sphi 0, %s20
    %s23 = sphi 0, %s21
    %s35 = sphi 0, %s37
    %s38 = sphi 0, %s35
    %s39 = sphi 0, %s38
    %s55 = sphi 0, %s39
    %s59 = sphi 0, %s59
    %s61 = sphi 0, %s59
    %s62 = sphi 0, %s61
    %s76 = sphi 0, %s62
    %s84 = sphi 0, %s86
    %s87 = sphi 0, %s84
    %s88 = sphi 0, %s87
    %s104 = sphi 0, %s88
    %s112 = sphi 0, %s114
    %s115 = sphi 0, %s112
    %s116 = sphi 0, %s115
    %s132 = sphi 0, %s116
    %s140 = sphi 0, %s142
    %s143 = sphi 0, %s140
    %s144 = sphi 0, %s143
    %s160 = sphi 0, %s144
  $region4: #{unet_block_forward.4} parent=0 // loop_header_branch
    %14 = sbr.rel (%p12) target = $region8
  $region5: #{unet_block_forward.4} parent=0 // loop_body
    %s16 = ssub.s32 %s11, 1
    %s17 = ssub.s32 %s11, 2
    %s24 = sadd.s32 1, %s19
    %p25 = scmp.ge.s32.totalorder %s24, 1
    %s26 = scalar_select %p25, 0, %s24
    %s27 = sadd.s32 1, %s18
    %s28 = scalar_select %p25, %s27, %s18
    %p29 = scmp.ge.s32.totalorder %s28, 2
    %s30 = scalar_select %p29, 0, %s28
    %s31 = ssub.s32 %s18, %s30
    %s32 = ssub.s32 %s19, %s26
    %s33 = sor.u32 %s31, %s32
    %p34 = scmp.eq.s32.totalorder %s33, 0
    %s36 = sadd.s32 %s35, 1
    %s37 = scalar_select %p34, %s35, %s36
    %p40 = pneg %p34
    %p41 = scmp.eq.s32.totalorder %s11, 1
    %p42 = por %p40, %p41
    %p43 = scmp.ne.s32.totalorder %s35, %s38
    %p44 = scmp.eq.s32.totalorder %s11, 0
    %p45 = por %p43, %p44
    %p46 = scmp.ne.s32.totalorder %s35, %s38
    %p47 = scmp.eq.s32.totalorder %s16, 1
    %p48 = por %p46, %p47
    %p49 = scmp.ne.s32.totalorder %s38, %s39
    %p50 = scmp.eq.s32.totalorder %s16, 0
    %p51 = por %p49, %p50
    %p52 = scmp.ne.s32.totalorder %s38, %s39
    %p53 = scmp.eq.s32.totalorder %s17, 1
    %p54 = por %p52, %p53
    %p56 = scmp.ne.s32.totalorder %s39, %s55
    %p57 = scmp.eq.s32.totalorder %s17, 0
    %p58 = por %p56, %p57
    %s60 = sadd.s32 %s59, 1
    %p63 = scmp.eq.s32.totalorder %s11, 1
    %p64 = scmp.ne.s32.totalorder %s59, %s61
    %p65 = scmp.eq.s32.totalorder %s11, 0
    %p66 = por %p64, %p65
    %p67 = scmp.ne.s32.totalorder %s59, %s61
    %p68 = scmp.eq.s32.totalorder %s16, 1
    %p69 = por %p67, %p68
    %p70 = scmp.ne.s32.totalorder %s61, %s62
    %p71 = scmp.eq.s32.totalorder %s16, 0
    %p72 = por %p70, %p71
    %p73 = scmp.ne.s32.totalorder %s61, %s62
    %p74 = scmp.eq.s32.totalorder %s17, 1
    %p75 = por %p73, %p74
    %p77 = scmp.ne.s32.totalorder %s62, %s76
    %p78 = scmp.eq.s32.totalorder %s17, 0
    %p79 = por %p77, %p78
    %s80 = ssub.s32 %s18, %s30
    %s81 = ssub.s32 %s19, %s26
    %s82 = sor.u32 %s80, %s81
    %p83 = scmp.eq.s32.totalorder %s82, 0
    %s85 = sadd.s32 %s84, 1
    %s86 = scalar_select %p83, %s84, %s85
    %p89 = pneg %p83
    %p90 = scmp.eq.s32.totalorder %s11, 1
    %p91 = por %p89, %p90
    %p92 = scmp.ne.s32.totalorder %s84, %s87
    %p93 = scmp.eq.s32.totalorder %s11, 0
    %p94 = por %p92, %p93
    %p95 = scmp.ne.s32.totalorder %s84, %s87
    %p96 = scmp.eq.s32.totalorder %s16, 1
    %p97 = por %p95, %p96
    %p98 = scmp.ne.s32.totalorder %s87, %s88
    %p99 = scmp.eq.s32.totalorder %s16, 0
    %p100 = por %p98, %p99
    %p101 = scmp.ne.s32.totalorder %s87, %s88
    %p102 = scmp.eq.s32.totalorder %s17, 1
    %p103 = por %p101, %p102
    %p105 = scmp.ne.s32.totalorder %s88, %s104
    %p106 = scmp.eq.s32.totalorder %s17, 0
    %p107 = por %p105, %p106
    %s108 = ssub.s32 %s19, %s26
    %s109 = ssub.s32 %s18, %s30
    %s110 = sor.u32 %s108, %s109
    %p111 = scmp.eq.s32.totalorder %s110, 0
    %s113 = sadd.s32 %s112, 1
    %s114 = scalar_select %p111, %s112, %s113
    %p117 = pneg %p111
    %p118 = scmp.eq.s32.totalorder %s11, 1
    %p119 = por %p117, %p118
    %p120 = scmp.ne.s32.totalorder %s112, %s115
    %p121 = scmp.eq.s32.totalorder %s11, 0
    %p122 = por %p120, %p121
    %p123 = scmp.ne.s32.totalorder %s112, %s115
    %p124 = scmp.eq.s32.totalorder %s16, 1
    %p125 = por %p123, %p124
    %p126 = scmp.ne.s32.totalorder %s115, %s116
    %p127 = scmp.eq.s32.totalorder %s16, 0
    %p128 = por %p126, %p127
    %p129 = scmp.ne.s32.totalorder %s115, %s116
    %p130 = scmp.eq.s32.totalorder %s17, 1
    %p131 = por %p129, %p130
    %p133 = scmp.ne.s32.totalorder %s116, %s132
    %p134 = scmp.eq.s32.totalorder %s17, 0
    %p135 = por %p133, %p134
    %s136 = ssub.s32 %s19, %s26
    %s137 = ssub.s32 %s18, %s30
    %s138 = sor.u32 %s136, %s137
    %p139 = scmp.eq.s32.totalorder %s138, 0
    %s141 = sadd.s32 %s140, 1
    %s142 = scalar_select %p139, %s140, %s141
    %p145 = pneg %p139
    %p146 = scmp.eq.s32.totalorder %s11, 1
    %p147 = por %p145, %p146
    %p148 = scmp.ne.s32.totalorder %s140, %s143
    %p149 = scmp.eq.s32.totalorder %s11, 0
    %p150 = por %p148, %p149
    %p151 = scmp.ne.s32.totalorder %s140, %s143
    %p152 = scmp.eq.s32.totalorder %s16, 1
    %p153 = por %p151, %p152
    %p154 = scmp.ne.s32.totalorder %s143, %s144
    %p155 = scmp.eq.s32.totalorder %s16, 0
    %p156 = por %p154, %p155
    %p157 = scmp.ne.s32.totalorder %s143, %s144
    %p158 = scmp.eq.s32.totalorder %s17, 1
    %p159 = por %p157, %p158
    %p161 = scmp.ne.s32.totalorder %s144, %s160
    %p162 = scmp.eq.s32.totalorder %s17, 0
    %p163 = por %p161, %p162
    %p164 = scmp.le.s32.totalorder 1, %s11
    %p165 = scmp.lt.s32.totalorder %s11, 3
    %p166 = pnand %p164, %p165
    %p167 = pneg %p166
    // Predicated region
    $region9: #{unet_block_forward.4} parent=5 // pred_check
      _
    $region10: #{unet_block_forward.4} parent=5 // pred_check_branch
      %169 = sbr.rel (%p166) target = $region12
    $region11: #{unet_block_forward.4} parent=5 // pred_region
      %s170 = ssub.s32 %s11, 1
      // Predicated region
      $region13: #{unet_block_forward.4} parent=11 // pred_check
        %p171 = pneg %p72
      $region14: #{unet_block_forward.4} parent=11 // pred_check_branch
        %173 = sbr.rel (%p171) target = $region16
      $region15: #{unet_block_forward.4} parent=11 // pred_region
        _
      $region16: #{unet_block_forward.4} parent=11 // pred_fallthru
        _
    $region12: #{unet_block_forward.4} parent=5 // pred_fallthru
      _
    %p174 = scmp.lt.s32.totalorder %s11, 2
    // Predicated region
    $region17: #{unet_block_forward.4} parent=5 // pred_check
      %p175 = pneg %p174
    $region18: #{unet_block_forward.4} parent=5 // pred_check_branch
      %177 = sbr.rel (%p175) target = $region20
    $region19: #{unet_block_forward.4} parent=5 // pred_region
      // Predicated region
      $region21: #{unet_block_forward.4} parent=19 // pred_check
        %p178 = pneg %p45
      $region22: #{unet_block_forward.4} parent=19 // pred_check_branch
        %180 = sbr.rel (%p178) target = $region24
      $region23: #{unet_block_forward.4} parent=19 // pred_region
        %p181 = scmp.lt.s32.totalorder %s18, 1
        %s182 = scalar_select %p181, %s18, 1
        %p183 = scmp.lt.s32.totalorder %s19, 0
        %s184 = scalar_select %p183, %s19, 0
        %s185 = smul.addr %s182, 64
        %s186 = sadd.s32 %s184, %s185
        %s187 = smul.addr %s186, 4
        %s188 = scalar_lea.vmem %s0, %s187
      $region24: #{unet_block_forward.4} parent=19 // pred_fallthru
        _
    $region20: #{unet_block_forward.4} parent=5 // pred_fallthru
      _
    %p189 = scmp.le.s32.totalorder 1, %s11
    %p190 = scmp.lt.s32.totalorder %s11, 3
    %p191 = pnand %p189, %p190
    %p192 = pneg %p191
    // Predicated region
    $region25: #{unet_block_forward.4} parent=5 // pred_check
      _
    $region26: #{unet_block_forward.4} parent=5 // pred_check_branch
      %194 = sbr.rel (%p191) target = $region28
    $region27: #{unet_block_forward.4} parent=5 // pred_region
      %s195 = ssub.s32 %s11, 1
      %p196 = scmp.lt.s32.totalorder %s20, 1
      %s197 = scalar_select %p196, %s20, 1
      %p198 = scmp.lt.s32.totalorder %s21, 0
      %s199 = scalar_select %p198, %s21, 0
      %s200 = smul.addr %s197, 64
      %s201 = sadd.s32 %s199, %s200
      %s202 = smul.addr %s201, 4
      %s203 = scalar_lea.vmem %s0, %s202
      %p204 = pneg %p51
      %p205 = pneg %p48
      %p206 = pneg %p72
      %p207 = pneg %p69
      %p208 = pneg %p100
      %p209 = pneg %p97
      %p210 = scmp.lt.s32.totalorder %s20, 1
      %s211 = scalar_select %p210, %s20, 1
      %p212 = scmp.lt.s32.totalorder %s21, 0
      %s213 = scalar_select %p212, %s21, 0
      %s214 = smul.addr %s211, 8
      %s215 = sadd.s32 %s213, %s214
      %s216 = smul.addr %s215, 2
      %s217 = scalar_lea.vmem %s2, %s216
      %p218 = pneg %p128
      %p219 = pneg %p125
      %p220 = scmp.lt.s32.totalorder %s21, 0
      %s221 = scalar_select %p220, %s21, 0
      %p222 = scmp.lt.s32.totalorder %s20, 1
      %s223 = scalar_select %p222, %s20, 1
      %s224 = smul.addr %s221, 2
      %s225 = sadd.s32 %s223, %s224
      %s226 = smul.addr %s225, 4
      %s227 = scalar_lea.vmem %s3, %s226
      %p228 = pneg %p156
      %p229 = pneg %p153
      %p230 = scmp.lt.s32.totalorder %s21, 0
      %s231 = scalar_select %p230, %s21, 0
      %p232 = scmp.lt.s32.totalorder %s20, 1
      %s233 = scalar_select %p232, %s20, 1
      %s234 = smul.addr %s231, 2
      %s235 = sadd.s32 %s233, %s234
      %s236 = smul.addr %s235, 4
      %s237 = scalar_lea.vmem %s4, %s236
      %p238 = scmp.lt.s32.totalorder %s20, 1
      %s239 = scalar_select %p238, %s20, 1
      %p240 = scmp.lt.s32.totalorder %s21, 0
      %s241 = scalar_select %p240, %s21, 0
      %s242 = smul.addr %s239, 64
      %s243 = sadd.s32 %s241, %s242
      %s244 = smul.addr %s243, 4
      %s245 = scalar_lea.vmem %s0, %s244
      %p246 = scmp.lt.s32.totalorder %s20, 1
      %s247 = scalar_select %p246, %s20, 1
      %p248 = scmp.lt.s32.totalorder %s21, 0
      %s249 = scalar_select %p248, %s21, 0
      %s250 = smul.addr %s247, 8
      %s251 = sadd.s32 %s249, %s250
      %s252 = smul.addr %s251, 2
      %s253 = scalar_lea.vmem %s2, %s252
      %p254 = scmp.lt.s32.totalorder %s21, 0
      %s255 = scalar_select %p254, %s21, 0
      %p256 = scmp.lt.s32.totalorder %s20, 1
      %s257 = scalar_select %p256, %s20, 1
      %s258 = smul.addr %s255, 2
      %s259 = sadd.s32 %s257, %s258
      %s260 = smul.addr %s259, 4
      %s261 = scalar_lea.vmem %s3, %s260
      %p262 = scmp.lt.s32.totalorder %s21, 0
      %s263 = scalar_select %p262, %s21, 0
      %p264 = scmp.lt.s32.totalorder %s20, 1
      %s265 = scalar_select %p264, %s20, 1
      %s266 = smul.addr %s263, 2
      %s267 = sadd.s32 %s265, %s266
      %s268 = smul.addr %s267, 4
      %s269 = scalar_lea.vmem %s4, %s268
      %v271 = vld [vmem:[%s1] sm:$0x3]
      %v272 = vld [vmem:[%s245] sm:$0xf]
      %v273 = vld [vmem:[%s245 + $0x4] sm:$0xf]
      %v274 = vld [vmem:[%s245 + $0x8] sm:$0xf]
      %v275 = vld [vmem:[%s245 + $0xc] sm:$0xf]
      %v276 = vld [vmem:[%s245 + $0x10] sm:$0xf]
      %v277 = vld [vmem:[%s245 + $0x14] sm:$0xf]
      %v278 = vld [vmem:[%s245 + $0x18] sm:$0xf]
      %v279 = vld [vmem:[%s245 + $0x1c] sm:$0xf]
      %v288 = vunpack.c.l.b16 %v272
      %v289 = vunpack.c.l.b16 %v273
      %v290 = vunpack.c.l.b16 %v274
      %v291 = vunpack.c.l.b16 %v275
      %v292 = vunpack.c.l.b16 %v276
      %v293 = vunpack.c.l.b16 %v277
      %v294 = vunpack.c.l.b16 %v278
      %v295 = vunpack.c.l.b16 %v279
      %v296 = vpack.c.b16 %v289, %v288
      %v297 = vpack.c.b16 %v291, %v290
      %v298 = vpack.c.b16 %v293, %v292
      %v299 = vpack.c.b16 %v295, %v294
      %vm304 = vcmask 523264
      %v306 = vsel %vm304, %v271, 0
      %308 = vmatprep.subr.bf16.mxu0 0
      %309 = vmatpush1.bf16.msra.mxu0 %v296
      %310 = vmatprep.subr.bf16.mxu0 0
      %311 = vmatpush1.bf16.msra.mxu0 %v297
      %312 = vmatprep.subr.bf16.mxu0 0
      %313 = vmatpush1.bf16.msra.mxu0 %v298
      %314 = vmatprep.subr.bf16.mxu0 0
      %315 = vmatpush1.bf16.msra.mxu0 %v299
      %316 = vmatprep.subr.bf16.mxu0 0
      %317 = vmatpush1.bf16.msra.mxu0 0
      %318 = vmatprep.subr.bf16.mxu0 0
      %319 = vmatpush1.bf16.msra.mxu0 0
      %320 = vmatprep.subr.bf16.mxu0 0
      %321 = vmatpush1.bf16.msra.mxu0 0
      %322 = vmatprep.subr.bf16.mxu0 0
      %323 = vmatpush1.bf16.msra.mxu0 0
      %324 = vmatprep.subr.bf16.mxu0 0
      %325 = vmatpush1.bf16.msra.mxu0 0
      %326 = vmatprep.subr.bf16.mxu0 0
      %327 = vmatpush1.bf16.msra.mxu0 0
      %328 = vmatprep.subr.bf16.mxu0 0
      %329 = vmatpush1.bf16.msra.mxu0 0
      %330 = vmatprep.subr.bf16.mxu0 0
      %331 = vmatpush1.bf16.msra.mxu0 0
      %332 = vmatprep.subr.bf16.mxu0 0
      %333 = vmatpush1.bf16.msra.mxu0 0
      %334 = vmatprep.subr.bf16.mxu0 0
      %335 = vmatpush1.bf16.msra.mxu0 0
      %336 = vmatprep.subr.bf16.mxu0 0
      %337 = vmatpush1.bf16.msra.mxu0 0
      %338 = vmatprep.subr.bf16.mxu0 0
      %339 = vmatpush1.bf16.msra.mxu0 0
      %340 = vmatprep.mubr.bf16.mxu0 0
      %341 = vmatmul.mubr.bf16.gmra.mrb[0].mxu0 %v306
      %v342 = vpop.f32.mrb[0].mxu0
      %v343 = vadd.f32 0.0, %v342
      %v344 = vpop.f32.mrb[0].mxu0
      %v345 = vpop.f32.mrb[0].mxu0
      %v346 = vpop.f32.mrb[0].mxu0
      %347 = vdwg.mxu0
      %v348 = vpack.c.bf16 %v343, %v343
      %vm349 = vcmask 517120
      %350 = vst.msk [vmem:[%s253] sm:$0x3] %vm349, %v348
      %vm351 = vcmask 519168
      %v352 = vsel %vm351, %v343, 0.0
      %353 = vadd.xlane.f32.xlu0 %v352
      %v354 = vpop.xlane.xlu0 %353
      %v355 = vadd.f32 %v354, 0.0
      %v356 = vmul.f32 %v343, %v343
      %v357 = vsel %vm351, %v356, 0.0
      %358 = vadd.xlane.f32.xlu0 %v357
      %v359 = vpop.xlane.xlu0 %358
      %v360 = vadd.f32 %v359, 0.0
      %s361 = scalar_lea.vmem %s1, 2
      %v362 = vld [vmem:[%s361] sm:$0x3]
      %s363 = scalar_lea.vmem %s245, 32
      %v364 = vld [vmem:[%s363] sm:$0xf]
      %v365 = vld [vmem:[%s363 + $0x4] sm:$0xf]
      %v366 = vld [vmem:[%s363 + $0x8] sm:$0xf]
      %v367 = vld [vmem:[%s363 + $0xc] sm:$0xf]
      %v368 = vld [vmem:[%s363 + $0x10] sm:$0xf]
      %v369 = vld [vmem:[%s363 + $0x14] sm:$0xf]
      %v370 = vld [vmem:[%s363 + $0x18] sm:$0xf]
      %v371 = vld [vmem:[%s363 + $0x1c] sm:$0xf]
      %v380 = vunpack.c.l.b16 %v364
      %v381 = vunpack.c.l.b16 %v365
      %v382 = vunpack.c.l.b16 %v366
      %v383 = vunpack.c.l.b16 %v367
      %v384 = vunpack.c.l.b16 %v368
      %v385 = vunpack.c.l.b16 %v369
      %v386 = vunpack.c.l.b16 %v370
      %v387 = vunpack.c.l.b16 %v371
      %v388 = vpack.c.b16 %v381, %v380
      %v389 = vpack.c.b16 %v383, %v382
      %v390 = vpack.c.b16 %v385, %v384
      %v391 = vpack.c.b16 %v387, %v386
      %v397 = vsel %vm304, %v362, 0
      %399 = vmatprep.subr.bf16.mxu0 0
      %400 = vmatpush1.bf16.msra.mxu0 %v388
      %401 = vmatprep.subr.bf16.mxu0 0
      %402 = vmatpush1.bf16.msra.mxu0 %v389
      %403 = vmatprep.subr.bf16.mxu0 0
      %404 = vmatpush1.bf16.msra.mxu0 %v390
      %405 = vmatprep.subr.bf16.mxu0 0
      %406 = vmatpush1.bf16.msra.mxu0 %v391
      %407 = vmatprep.subr.bf16.mxu0 0
      %408 = vmatpush1.bf16.msra.mxu0 0
      %409 = vmatprep.subr.bf16.mxu0 0
      %410 = vmatpush1.bf16.msra.mxu0 0
      %411 = vmatprep.subr.bf16.mxu0 0
      %412 = vmatpush1.bf16.msra.mxu0 0
      %413 = vmatprep.subr.bf16.mxu0 0
      %414 = vmatpush1.bf16.msra.mxu0 0
      %415 = vmatprep.subr.bf16.mxu0 0
      %416 = vmatpush1.bf16.msra.mxu0 0
      %417 = vmatprep.subr.bf16.mxu0 0
      %418 = vmatpush1.bf16.msra.mxu0 0
      %419 = vmatprep.subr.bf16.mxu0 0
      %420 = vmatpush1.bf16.msra.mxu0 0
      %421 = vmatprep.subr.bf16.mxu0 0
      %422 = vmatpush1.bf16.msra.mxu0 0
      %423 = vmatprep.subr.bf16.mxu0 0
      %424 = vmatpush1.bf16.msra.mxu0 0
      %425 = vmatprep.subr.bf16.mxu0 0
      %426 = vmatpush1.bf16.msra.mxu0 0
      %427 = vmatprep.subr.bf16.mxu0 0
      %428 = vmatpush1.bf16.msra.mxu0 0
      %429 = vmatprep.subr.bf16.mxu0 0
      %430 = vmatpush1.bf16.msra.mxu0 0
      %431 = vmatprep.mubr.bf16.mxu0 0
      %432 = vmatmul.mubr.bf16.gmra.mrb[0].mxu0 %v397
      %v433 = vpop.f32.mrb[0].mxu0
      %v434 = vadd.f32 0.0, %v433
      %v435 = vpop.f32.mrb[0].mxu0
      %v436 = vpop.f32.mrb[0].mxu0
      %v437 = vpop.f32.mrb[0].mxu0
      %438 = vdwg.mxu0
      %v439 = vpack.c.bf16 %v434, %v434
      %s440 = scalar_lea.vmem %s253, 2
      %441 = vst.msk [vmem:[%s440] sm:$0x3] %vm349, %v439
      %v442 = vsel %vm351, %v434, 0.0
      %443 = vadd.xlane.f32.xlu0 %v442
      %v444 = vpop.xlane.xlu0 %443
      %v445 = vadd.f32 %v355, %v444
      %v446 = vmul.f32 %v434, %v434
      %v447 = vsel %vm351, %v446, 0.0
      %448 = vadd.xlane.f32.xlu0 %v447
      %v449 = vpop.xlane.xlu0 %448
      %v450 = vadd.f32 %v360, %v449
      %s451 = scalar_lea.vmem %s1, 4
      %v452 = vld [vmem:[%s451] sm:$0x3]
      %s453 = scalar_lea.vmem %s245, 64
      %v454 = vld [vmem:[%s453] sm:$0xf]
      %v455 = vld [vmem:[%s453 + $0x4] sm:$0xf]
      %v456 = vld [vmem:[%s453 + $0x8] sm:$0xf]
      %v457 = vld [vmem:[%s453 + $0xc] sm:$0xf]
      %v458 = vld [vmem:[%s453 + $0x10] sm:$0xf]
      %v459 = vld [vmem:[%s453 + $0x14] sm:$0xf]
      %v460 = vld [vmem:[%s453 + $0x18] sm:$0xf]
      %v461 = vld [vmem:[%s453 + $0x1c] sm:$0xf]
      %v470 = vunpack.c.l.b16 %v454
      %v471 = vunpack.c.l.b16 %v455
      %v472 = vunpack.c.l.b16 %v456
      %v473 = vunpack.c.l.b16 %v457
      %v474 = vunpack.c.l.b16 %v458
      %v475 = vunpack.c.l.b16 %v459
      %v476 = vunpack.c.l.b16 %v460
      %v477 = vunpack.c.l.b16 %v461
      %v478 = vpack.c.b16 %v471, %v470
      %v479 = vpack.c.b16 %v473, %v472
      %v480 = vpack.c.b16 %v475, %v474
      %v481 = vpack.c.b16 %v477, %v476
      %v487 = vsel %vm304, %v452, 0
      %489 = vmatprep.subr.bf16.mxu0 0
      %490 = vmatpush1.bf16.msra.mxu0 %v478
      %491 = vmatprep.subr.bf16.mxu0 0
      %492 = vmatpush1.bf16.msra.mxu0 %v479
      %493 = vmatprep.subr.bf16.mxu0 0
      %494 = vmatpush1.bf16.msra.mxu0 %v480
      %495 = vmatprep.subr.bf16.mxu0 0
      %496 = vmatpush1.bf16.msra.mxu0 %v481
      %497 = vmatprep.subr.bf16.mxu0 0
      %498 = vmatpush1.bf16.msra.mxu0 0
      %499 = vmatprep.subr.bf16.mxu0 0
      %500 = vmatpush1.bf16.msra.mxu0 0
      %501 = vmatprep.subr.bf16.mxu0 0
      %502 = vmatpush1.bf16.msra.mxu0 0
      %503 = vmatprep.subr.bf16.mxu0 0
      %504 = vmatpush1.bf16.msra.mxu0 0
      %505 = vmatprep.subr.bf16.mxu0 0
      %506 = vmatpush1.bf16.msra.mxu0 0
      %507 = vmatprep.subr.bf16.mxu0 0
      %508 = vmatpush1.bf16.msra.mxu0 0
      %509 = vmatprep.subr.bf16.mxu0 0
      %510 = vmatpush1.bf16.msra.mxu0 0
      %511 = vmatprep.subr.bf16.mxu0 0
      %512 = vmatpush1.bf16.msra.mxu0 0
      %513 = vmatprep.subr.bf16.mxu0 0
      %514 = vmatpush1.bf16.msra.mxu0 0
      %515 = vmatprep.subr.bf16.mxu0 0
      %516 = vmatpush1.bf16.msra.mxu0 0
      %517 = vmatprep.subr.bf16.mxu0 0
      %518 = vmatpush1.bf16.msra.mxu0 0
      %519 = vmatprep.subr.bf16.mxu0 0
      %520 = vmatpush1.bf16.msra.mxu0 0
      %521 = vmatprep.mubr.bf16.mxu0 0
      %522 = vmatmul.mubr.bf16.gmra.mrb[0].mxu0 %v487
      %v523 = vpop.f32.mrb[0].mxu0
      %v524 = vadd.f32 0.0, %v523
      %v525 = vpop.f32.mrb[0].mxu0
      %v526 = vpop.f32.mrb[0].mxu0
      %v527 = vpop.f32.mrb[0].mxu0
      %528 = vdwg.mxu0
      %v529 = vpack.c.bf16 %v524, %v524
      %s530 = scalar_lea.vmem %s253, 4
      %531 = vst.msk [vmem:[%s530] sm:$0x3] %vm349, %v529
      %v532 = vsel %vm351, %v524, 0.0
      %533 = vadd.xlane.f32.xlu0 %v532
      %v534 = vpop.xlane.xlu0 %533
      %v535 = vadd.f32 %v445, %v534
      %v536 = vmul.f32 %v524, %v524
      %v537 = vsel %vm351, %v536, 0.0
      %538 = vadd.xlane.f32.xlu0 %v537
      %v539 = vpop.xlane.xlu0 %538
      %v540 = vadd.f32 %v450, %v539
      %s541 = scalar_lea.vmem %s1, 6
      %v542 = vld [vmem:[%s541] sm:$0x3]
      %s543 = scalar_lea.vmem %s245, 96
      %v544 = vld [vmem:[%s543] sm:$0xf]
      %v545 = vld [vmem:[%s543 + $0x4] sm:$0xf]
      %v546 = vld [vmem:[%s543 + $0x8] sm:$0xf]
      %v547 = vld [vmem:[%s543 + $0xc] sm:$0xf]
      %v548 = vld [vmem:[%s543 + $0x10] sm:$0xf]
      %v549 = vld [vmem:[%s543 + $0x14] sm:$0xf]
      %v550 = vld [vmem:[%s543 + $0x18] sm:$0xf]
      %v551 = vld [vmem:[%s543 + $0x1c] sm:$0xf]
      %v560 = vunpack.c.l.b16 %v544
      %v561 = vunpack.c.l.b16 %v545
      %v562 = vunpack.c.l.b16 %v546
      %v563 = vunpack.c.l.b16 %v547
      %v564 = vunpack.c.l.b16 %v548
      %v565 = vunpack.c.l.b16 %v549
      %v566 = vunpack.c.l.b16 %v550
      %v567 = vunpack.c.l.b16 %v551
      %v568 = vpack.c.b16 %v561, %v560
      %v569 = vpack.c.b16 %v563, %v562
      %v570 = vpack.c.b16 %v565, %v564
      %v571 = vpack.c.b16 %v567, %v566
      %v577 = vsel %vm304, %v542, 0
      %579 = vmatprep.subr.bf16.mxu0 0
      %580 = vmatpush1.bf16.msra.mxu0 %v568
      %581 = vmatprep.subr.bf16.mxu0 0
      %582 = vmatpush1.bf16.msra.mxu0 %v569
      %583 = vmatprep.subr.bf16.mxu0 0
      %584 = vmatpush1.bf16.msra.mxu0 %v570
      %585 = vmatprep.subr.bf16.mxu0 0
      %586 = vmatpush1.bf16.msra.mxu0 %v571
      %587 = vmatprep.subr.bf16.mxu0 0
      %588 = vmatpush1.bf16.msra.mxu0 0
      %589 = vmatprep.subr.bf16.mxu0 0
      %590 = vmatpush1.bf16.msra.mxu0 0
      %591 = vmatprep.subr.bf16.mxu0 0
      %592 = vmatpush1.bf16.msra.mxu0 0
      %593 = vmatprep.subr.bf16.mxu0 0
      %594 = vmatpush1.bf16.msra.mxu0 0
      %595 = vmatprep.subr.bf16.mxu0 0
      %596 = vmatpush1.bf16.msra.mxu0 0
      %597 = vmatprep.subr.bf16.mxu0 0
      %598 = vmatpush1.bf16.msra.mxu0 0
      %599 = vmatprep.subr.bf16.mxu0 0
      %600 = vmatpush1.bf16.msra.mxu0 0
      %601 = vmatprep.subr.bf16.mxu0 0
      %602 = vmatpush1.bf16.msra.mxu0 0
      %603 = vmatprep.subr.bf16.mxu0 0
      %604 = vmatpush1.bf16.msra.mxu0 0
      %605 = vmatprep.subr.bf16.mxu0 0
      %606 = vmatpush1.bf16.msra.mxu0 0
      %607 = vmatprep.subr.bf16.mxu0 0
      %608 = vmatpush1.bf16.msra.mxu0 0
      %609 = vmatprep.subr.bf16.mxu0 0
      %610 = vmatpush1.bf16.msra.mxu0 0
      %611 = vmatprep.mubr.bf16.mxu0 0
      %612 = vmatmul.mubr.bf16.gmra.mrb[0].mxu0 %v577
      %v613 = vpop.f32.mrb[0].mxu0
      %v614 = vadd.f32 0.0, %v613
      %v615 = vpop.f32.mrb[0].mxu0
      %v616 = vpop.f32.mrb[0].mxu0
      %v617 = vpop.f32.mrb[0].mxu0
      %618 = vdwg.mxu0
      %v619 = vpack.c.bf16 %v614, %v614
      %s620 = scalar_lea.vmem %s253, 6
      %621 = vst.msk [vmem:[%s620] sm:$0x3] %vm349, %v619
      %v622 = vsel %vm351, %v614, 0.0
      %623 = vadd.xlane.f32.xlu0 %v622
      %v624 = vpop.xlane.xlu0 %623
      %v625 = vadd.f32 %v535, %v624
      %v626 = vmul.f32 %v614, %v614
      %v627 = vsel %vm351, %v626, 0.0
      %628 = vadd.xlane.f32.xlu0 %v627
      %v629 = vpop.xlane.xlu0 %628
      %v630 = vadd.f32 %v540, %v629
      %s631 = scalar_lea.vmem %s1, 8
      %v632 = vld [vmem:[%s631] sm:$0x3]
      %s633 = scalar_lea.vmem %s245, 128
      %v634 = vld [vmem:[%s633] sm:$0xf]
      %v635 = vld [vmem:[%s633 + $0x4] sm:$0xf]
      %v636 = vld [vmem:[%s633 + $0x8] sm:$0xf]
      %v637 = vld [vmem:[%s633 + $0xc] sm:$0xf]
      %v638 = vld [vmem:[%s633 + $0x10] sm:$0xf]
      %v639 = vld [vmem:[%s633 + $0x14] sm:$0xf]
      %v640 = vld [vmem:[%s633 + $0x18] sm:$0xf]
      %v641 = vld [vmem:[%s633 + $0x1c] sm:$0xf]
      %v650 = vunpack.c.l.b16 %v634
      %v651 = vunpack.c.l.b16 %v635
      %v652 = vunpack.c.l.b16 %v636
      %v653 = vunpack.c.l.b16 %v637
      %v654 = vunpack.c.l.b16 %v638
      %v655 = vunpack.c.l.b16 %v639
      %v656 = vunpack.c.l.b16 %v640
      %v657 = vunpack.c.l.b16 %v641
      %v658 = vpack.c.b16 %v651, %v650
      %v659 = vpack.c.b16 %v653, %v652
      %v660 = vpack.c.b16 %v655, %v654
      %v661 = vpack.c.b16 %v657, %v656
      %v667 = vsel %vm304, %v632, 0
      %669 = vmatprep.subr.bf16.mxu0 0
      %670 = vmatpush1.bf16.msra.mxu0 %v658
      %671 = vmatprep.subr.bf16.mxu0 0
      %672 = vmatpush1.bf16.msra.mxu0 %v659
      %673 = vmatprep.subr.bf16.mxu0 0
      %674 = vmatpush1.bf16.msra.mxu0 %v660
      %675 = vmatprep.subr.bf16.mxu0 0
      %676 = vmatpush1.bf16.msra.mxu0 %v661
      %677 = vmatprep.subr.bf16.mxu0 0
      %678 = vmatpush1.bf16.msra.mxu0 0
      %679 = vmatprep.subr.bf16.mxu0 0
      %680 = vmatpush1.bf16.msra.mxu0 0
      %681 = vmatprep.subr.bf16.mxu0 0
      %682 = vmatpush1.bf16.msra.mxu0 0
      %683 = vmatprep.subr.bf16.mxu0 0
      %684 = vmatpush1.bf16.msra.mxu0 0
      %685 = vmatprep.subr.bf16.mxu0 0
      %686 = vmatpush1.bf16.msra.mxu0 0
      %687 = vmatprep.subr.bf16.mxu0 0
      %688 = vmatpush1.bf16.msra.mxu0 0
      %689 = vmatprep.subr.bf16.mxu0 0
      %690 = vmatpush1.bf16.msra.mxu0 0
      %691 = vmatprep.subr.bf16.mxu0 0
      %692 = vmatpush1.bf16.msra.mxu0 0
      %693 = vmatprep.subr.bf16.mxu0 0
      %694 = vmatpush1.bf16.msra.mxu0 0
      %695 = vmatprep.subr.bf16.mxu0 0
      %696 = vmatpush1.bf16.msra.mxu0 0
      %697 = vmatprep.subr.bf16.mxu0 0
      %698 = vmatpush1.bf16.msra.mxu0 0
      %699 = vmatprep.subr.bf16.mxu0 0
      %700 = vmatpush1.bf16.msra.mxu0 0
      %701 = vmatprep.mubr.bf16.mxu0 0
      %702 = vmatmul.mubr.bf16.gmra.mrb[0].mxu0 %v667
      %v703 = vpop.f32.mrb[0].mxu0
      %v704 = vadd.f32 0.0, %v703
      %v705 = vpop.f32.mrb[0].mxu0
      %v706 = vpop.f32.mrb[0].mxu0
      %v707 = vpop.f32.mrb[0].mxu0
      %708 = vdwg.mxu0
      %v709 = vpack.c.bf16 %v704, %v704
      %s710 = scalar_lea.vmem %s253, 8
      %711 = vst.msk [vmem:[%s710] sm:$0x3] %vm349, %v709
      %v712 = vsel %vm351, %v704, 0.0
      %713 = vadd.xlane.f32.xlu0 %v712
      %v714 = vpop.xlane.xlu0 %713
      %v715 = vadd.f32 %v625, %v714
      %v716 = vmul.f32 %v704, %v704
      %v717 = vsel %vm351, %v716, 0.0
      %718 = vadd.xlane.f32.xlu0 %v717
      %v719 = vpop.xlane.xlu0 %718
      %v720 = vadd.f32 %v630, %v719
      %s721 = scalar_lea.vmem %s1, 10
      %v722 = vld [vmem:[%s721] sm:$0x3]
      %s723 = scalar_lea.vmem %s245, 160
      %v724 = vld [vmem:[%s723] sm:$0xf]
      %v725 = vld [vmem:[%s723 + $0x4] sm:$0xf]
      %v726 = vld [vmem:[%s723 + $0x8] sm:$0xf]
      %v727 = vld [vmem:[%s723 + $0xc] sm:$0xf]
      %v728 = vld [vmem:[%s723 + $0x10] sm:$0xf]
      %v729 = vld [vmem:[%s723 + $0x14] sm:$0xf]
      %v730 = vld [vmem:[%s723 + $0x18] sm:$0xf]
      %v731 = vld [vmem:[%s723 + $0x1c] sm:$0xf]
      %v740 = vunpack.c.l.b16 %v724
      %v741 = vunpack.c.l.b16 %v725
      %v742 = vunpack.c.l.b16 %v726
      %v743 = vunpack.c.l.b16 %v727
      %v744 = vunpack.c.l.b16 %v728
      %v745 = vunpack.c.l.b16 %v729
      %v746 = vunpack.c.l.b16 %v730
      %v747 = vunpack.c.l.b16 %v731
      %v748 = vpack.c.b16 %v741, %v740
      %v749 = vpack.c.b16 %v743, %v742
      %v750 = vpack.c.b16 %v745, %v744
      %v751 = vpack.c.b16 %v747, %v746
      %v757 = vsel %vm304, %v722, 0
      %759 = vmatprep.subr.bf16.mxu0 0
      %760 = vmatpush1.bf16.msra.mxu0 %v748
      %761 = vmatprep.subr.bf16.mxu0 0
      %762 = vmatpush1.bf16.msra.mxu0 %v749
      %763 = vmatprep.subr.bf16.mxu0 0
      %764 = vmatpush1.bf16.msra.mxu0 %v750
      %765 = vmatprep.subr.bf16.mxu0 0
      %766 = vmatpush1.bf16.msra.mxu0 %v751
      %767 = vmatprep.subr.bf16.mxu0 0
      %768 = vmatpush1.bf16.msra.mxu0 0
      %769 = vmatprep.subr.bf16.mxu0 0
      %770 = vmatpush1.bf16.msra.mxu0 0
      %771 = vmatprep.subr.bf16.mxu0 0
      %772 = vmatpush1.bf16.msra.mxu0 0
      %773 = vmatprep.subr.bf16.mxu0 0
      %774 = vmatpush1.bf16.msra.mxu0 0
      %775 = vmatprep.subr.bf16.mxu0 0
      %776 = vmatpush1.bf16.msra.mxu0 0
      %777 = vmatprep.subr.bf16.mxu0 0
      %778 = vmatpush1.bf16.msra.mxu0 0
      %779 = vmatprep.subr.bf16.mxu0 0
      %780 = vmatpush1.bf16.msra.mxu0 0
      %781 = vmatprep.subr.bf16.mxu0 0
      %782 = vmatpush1.bf16.msra.mxu0 0
      %783 = vmatprep.subr.bf16.mxu0 0
      %784 = vmatpush1.bf16.msra.mxu0 0
      %785 = vmatprep.subr.bf16.mxu0 0
      %786 = vmatpush1.bf16.msra.mxu0 0
      %787 = vmatprep.subr.bf16.mxu0 0
      %788 = vmatpush1.bf16.msra.mxu0 0
      %789 = vmatprep.subr.bf16.mxu0 0
      %790 = vmatpush1.bf16.msra.mxu0 0
      %791 = vmatprep.mubr.bf16.mxu0 0
      %792 = vmatmul.mubr.bf16.gmra.mrb[0].mxu0 %v757
      %v793 = vpop.f32.mrb[0].mxu0
      %v794 = vadd.f32 0.0, %v793
      %v795 = vpop.f32.mrb[0].mxu0
      %v796 = vpop.f32.mrb[0].mxu0
      %v797 = vpop.f32.mrb[0].mxu0
      %798 = vdwg.mxu0
      %v799 = vpack.c.bf16 %v794, %v794
      %s800 = scalar_lea.vmem %s253, 10
      %801 = vst.msk [vmem:[%s800] sm:$0x3] %vm349, %v799
      %v802 = vsel %vm351, %v794, 0.0
      %803 = vadd.xlane.f32.xlu0 %v802
      %v804 = vpop.xlane.xlu0 %803
      %v805 = vadd.f32 %v715, %v804
      %v806 = vmul.f32 %v794, %v794
      %v807 = vsel %vm351, %v806, 0.0
      %808 = vadd.xlane.f32.xlu0 %v807
      %v809 = vpop.xlane.xlu0 %808
      %v810 = vadd.f32 %v720, %v809
      %s811 = scalar_lea.vmem %s1, 12
      %v812 = vld [vmem:[%s811] sm:$0x3]
      %s813 = scalar_lea.vmem %s245, 192
      %v814 = vld [vmem:[%s813] sm:$0xf]
      %v815 = vld [vmem:[%s813 + $0x4] sm:$0xf]
      %v816 = vld [vmem:[%s813 + $0x8] sm:$0xf]
      %v817 = vld [vmem:[%s813 + $0xc] sm:$0xf]
      %v818 = vld [vmem:[%s813 + $0x10] sm:$0xf]
      %v819 = vld [vmem:[%s813 + $0x14] sm:$0xf]
      %v820 = vld [vmem:[%s813 + $0x18] sm:$0xf]
      %v821 = vld [vmem:[%s813 + $0x1c] sm:$0xf]
      %v830 = vunpack.c.l.b16 %v814
      %v831 = vunpack.c.l.b16 %v815
      %v832 = vunpack.c.l.b16 %v816
      %v833 = vunpack.c.l.b16 %v817
      %v834 = vunpack.c.l.b16 %v818
      %v835 = vunpack.c.l.b16 %v819
      %v836 = vunpack.c.l.b16 %v820
      %v837 = vunpack.c.l.b16 %v821
      %v838 = vpack.c.b16 %v831, %v830
      %v839 = vpack.c.b16 %v833, %v832
      %v840 = vpack.c.b16 %v835, %v834
      %v841 = vpack.c.b16 %v837, %v836
      %v847 = vsel %vm304, %v812, 0
      %849 = vmatprep.subr.bf16.mxu0 0
      %850 = vmatpush1.bf16.msra.mxu0 %v838
      %851 = vmatprep.subr.bf16.mxu0 0
      %852 = vmatpush1.bf16.msra.mxu0 %v839
      %853 = vmatprep.subr.bf16.mxu0 0
      %854 = vmatpush1.bf16.msra.mxu0 %v840
      %855 = vmatprep.subr.bf16.mxu0 0
      %856 = vmatpush1.bf16.msra.mxu0 %v841
      %857 = vmatprep.subr.bf16.mxu0 0
      %858 = vmatpush1.bf16.msra.mxu0 0
      %859 = vmatprep.subr.bf16.mxu0 0
      %860 = vmatpush1.bf16.msra.mxu0 0
      %861 = vmatprep.subr.bf16.mxu0 0
      %862 = vmatpush1.bf16.msra.mxu0 0
      %863 = vmatprep.subr.bf16.mxu0 0
      %864 = vmatpush1.bf16.msra.mxu0 0
      %865 = vmatprep.subr.bf16.mxu0 0
      %866 = vmatpush1.bf16.msra.mxu0 0
      %867 = vmatprep.subr.bf16.mxu0 0
      %868 = vmatpush1.bf16.msra.mxu0 0
      %869 = vmatprep.subr.bf16.mxu0 0
      %870 = vmatpush1.bf16.msra.mxu0 0
      %871 = vmatprep.subr.bf16.mxu0 0
      %872 = vmatpush1.bf16.msra.mxu0 0
      %873 = vmatprep.subr.bf16.mxu0 0
      %874 = vmatpush1.bf16.msra.mxu0 0
      %875 = vmatprep.subr.bf16.mxu0 0
      %876 = vmatpush1.bf16.msra.mxu0 0
      %877 = vmatprep.subr.bf16.mxu0 0
      %878 = vmatpush1.bf16.msra.mxu0 0
      %879 = vmatprep.subr.bf16.mxu0 0
      %880 = vmatpush1.bf16.msra.mxu0 0
      %881 = vmatprep.mubr.bf16.mxu0 0
      %882 = vmatmul.mubr.bf16.gmra.mrb[0].mxu0 %v847
      %v883 = vpop.f32.mrb[0].mxu0
      %v884 = vadd.f32 0.0, %v883
      %v885 = vpop.f32.mrb[0].mxu0
      %v886 = vpop.f32.mrb[0].mxu0
      %v887 = vpop.f32.mrb[0].mxu0
      %888 = vdwg.mxu0
      %v889 = vpack.c.bf16 %v884, %v884
      %s890 = scalar_lea.vmem %s253, 12
      %891 = vst.msk [vmem:[%s890] sm:$0x3] %vm349, %v889
      %v892 = vsel %vm351, %v884, 0.0
      %893 = vadd.xlane.f32.xlu0 %v892
      %v894 = vpop.xlane.xlu0 %893
      %v895 = vadd.f32 %v805, %v894
      %v896 = vmul.f32 %v884, %v884
      %v897 = vsel %vm351, %v896, 0.0
      %898 = vadd.xlane.f32.xlu0 %v897
      %v899 = vpop.xlane.xlu0 %898
      %v900 = vadd.f32 %v810, %v899
      %s901 = scalar_lea.vmem %s1, 14
      %v902 = vld [vmem:[%s901] sm:$0x3]
      %s903 = scalar_lea.vmem %s245, 224
      %v904 = vld [vmem:[%s903] sm:$0xf]
      %v905 = vld [vmem:[%s903 + $0x4] sm:$0xf]
      %v906 = vld [vmem:[%s903 + $0x8] sm:$0xf]
      %v907 = vld [vmem:[%s903 + $0xc] sm:$0xf]
      %v908 = vld [vmem:[%s903 + $0x10] sm:$0xf]
      %v909 = vld [vmem:[%s903 + $0x14] sm:$0xf]
      %v910 = vld [vmem:[%s903 + $0x18] sm:$0xf]
      %v911 = vld [vmem:[%s903 + $0x1c] sm:$0xf]
      %v920 = vunpack.c.l.b16 %v904
      %v921 = vunpack.c.l.b16 %v905
      %v922 = vunpack.c.l.b16 %v906
      %v923 = vunpack.c.l.b16 %v907
      %v924 = vunpack.c.l.b16 %v908
      %v925 = vunpack.c.l.b16 %v909
      %v926 = vunpack.c.l.b16 %v910
      %v927 = vunpack.c.l.b16 %v911
      %v928 = vpack.c.b16 %v921, %v920
      %v929 = vpack.c.b16 %v923, %v922
      %v930 = vpack.c.b16 %v925, %v924
      %v931 = vpack.c.b16 %v927, %v926
      %v937 = vsel %vm304, %v902, 0
      %939 = vmatprep.subr.bf16.mxu0 0
      %940 = vmatpush1.bf16.msra.mxu0 %v928
      %941 = vmatprep.subr.bf16.mxu0 0
      %942 = vmatpush1.bf16.msra.mxu0 %v929
      %943 = vmatprep.subr.bf16.mxu0 0
      %944 = vmatpush1.bf16.msra.mxu0 %v930
      %945 = vmatprep.subr.bf16.mxu0 0
      %946 = vmatpush1.bf16.msra.mxu0 %v931
      %947 = vmatprep.subr.bf16.mxu0 0
      %948 = vmatpush1.bf16.msra.mxu0 0
      %949 = vmatprep.subr.bf16.mxu0 0
      %950 = vmatpush1.bf16.msra.mxu0 0
      %951 = vmatprep.subr.bf16.mxu0 0
      %952 = vmatpush1.bf16.msra.mxu0 0
      %953 = vmatprep.subr.bf16.mxu0 0
      %954 = vmatpush1.bf16.msra.mxu0 0
      %955 = vmatprep.subr.bf16.mxu0 0
      %956 = vmatpush1.bf16.msra.mxu0 0
      %957 = vmatprep.subr.bf16.mxu0 0
      %958 = vmatpush1.bf16.msra.mxu0 0
      %959 = vmatprep.subr.bf16.mxu0 0
      %960 = vmatpush1.bf16.msra.mxu0 0
      %961 = vmatprep.subr.bf16.mxu0 0
      %962 = vmatpush1.bf16.msra.mxu0 0
      %963 = vmatprep.subr.bf16.mxu0 0
      %964 = vmatpush1.bf16.msra.mxu0 0
      %965 = vmatprep.subr.bf16.mxu0 0
      %966 = vmatpush1.bf16.msra.mxu0 0
      %967 = vmatprep.subr.bf16.mxu0 0
      %968 = vmatpush1.bf16.msra.mxu0 0
      %969 = vmatprep.subr.bf16.mxu0 0
      %970 = vmatpush1.bf16.msra.mxu0 0
      %971 = vmatprep.mubr.bf16.mxu0 0
      %972 = vmatmul.mubr.bf16.gmra.mrb[0].mxu0 %v937
      %v973 = vpop.f32.mrb[0].mxu0
      %v974 = vadd.f32 0.0, %v973
      %v975 = vpop.f32.mrb[0].mxu0
      %v976 = vpop.f32.mrb[0].mxu0
      %v977 = vpop.f32.mrb[0].mxu0
      %978 = vdwg.mxu0
      %v979 = vpack.c.bf16 %v974, %v974
      %s980 = scalar_lea.vmem %s253, 14
      %981 = vst.msk [vmem:[%s980] sm:$0x3] %vm349, %v979
      %v982 = vsel %vm351, %v974, 0.0
      %983 = vadd.xlane.f32.xlu0 %v982
      %v984 = vpop.xlane.xlu0 %983
      %v985 = vadd.f32 %v895, %v984
      %v986 = vmul.f32 %v974, %v974
      %v987 = vsel %vm351, %v986, 0.0
      %988 = vadd.xlane.f32.xlu0 %v987
      %v989 = vpop.xlane.xlu0 %988
      %v990 = vadd.f32 %v900, %v989
      %vm991 = vcmask 3072
      %992 = vst.msk [vmem:[%s261] sm:$0xf] %vm991, %v985
      %993 = vst.msk [vmem:[%s269] sm:$0xf] %vm991, %v990
      %p994 = scmp.lt.s32.totalorder %s20, 1
      %s995 = scalar_select %p994, %s20, 1
      %p996 = scmp.lt.s32.totalorder %s21, 0
      %s997 = scalar_select %p996, %s21, 0
      %s998 = smul.addr %s995, 8
      %s999 = sadd.s32 %s997, %s998
      %s1000 = smul.addr %s999, 2
      %s1001 = scalar_lea.vmem %s2, %s1000
      %p1002 = scmp.lt.s32.totalorder %s21, 0
      %s1003 = scalar_select %p1002, %s21, 0
      %p1004 = scmp.lt.s32.totalorder %s20, 1
      %s1005 = scalar_select %p1004, %s20, 1
      %s1006 = smul.addr %s1003, 2
      %s1007 = sadd.s32 %s1005, %s1006
      %s1008 = smul.addr %s1007, 4
      %s1009 = scalar_lea.vmem %s3, %s1008
      %p1010 = scmp.lt.s32.totalorder %s21, 0
      %s1011 = scalar_select %p1010, %s21, 0
      %p1012 = scmp.lt.s32.totalorder %s20, 1
      %s1013 = scalar_select %p1012, %s20, 1
      %s1014 = smul.addr %s1011, 2
      %s1015 = sadd.s32 %s1013, %s1014
      %s1016 = smul.addr %s1015, 4
      %s1017 = scalar_lea.vmem %s4, %s1016
      // Predicated region
      $region29: #{unet_block_forward.4} parent=27 // pred_check
        %p1018 = pneg %p97
      $region30: #{unet_block_forward.4} parent=27 // pred_check_branch
        %1020 = sbr.rel (%p1018) target = $region32
      $region31: #{unet_block_forward.4} parent=27 // pred_region
        _
      $region32: #{unet_block_forward.4} parent=27 // pred_fallthru
        _
      // Predicated region
      $region33: #{unet_block_forward.4} parent=27 // pred_check
        %p1021 = pneg %p125
      $region34: #{unet_block_forward.4} parent=27 // pred_check_branch
        %1023 = sbr.rel (%p1021) target = $region36
      $region35: #{unet_block_forward.4} parent=27 // pred_region
        _
      $region36: #{unet_block_forward.4} parent=27 // pred_fallthru
        _
      // Predicated region
      $region37: #{unet_block_forward.4} parent=27 // pred_check
        %p1024 = pneg %p153
      $region38: #{unet_block_forward.4} parent=27 // pred_check_branch
        %1026 = sbr.rel (%p1024) target = $region40
      $region39: #{unet_block_forward.4} parent=27 // pred_region
        _
      $region40: #{unet_block_forward.4} parent=27 // pred_fallthru
        _
    $region28: #{unet_block_forward.4} parent=5 // pred_fallthru
      _
    %p1027 = scmp.le.s32.totalorder 2, %s11
    // Predicated region
    $region41: #{unet_block_forward.4} parent=5 // pred_check
      %p1028 = pneg %p1027
    $region42: #{unet_block_forward.4} parent=5 // pred_check_branch
      %1030 = sbr.rel (%p1028) target = $region44
    $region43: #{unet_block_forward.4} parent=5 // pred_region
      %s1031 = ssub.s32 %s11, 2
      // Predicated region
      $region45: #{unet_block_forward.4} parent=43 // pred_check
        %p1032 = pneg %p103
      $region46: #{unet_block_forward.4} parent=43 // pred_check_branch
        %1034 = sbr.rel (%p1032) target = $region48
      $region47: #{unet_block_forward.4} parent=43 // pred_region
        %p1035 = scmp.lt.s32.totalorder %s22, 1
        %s1036 = scalar_select %p1035, %s22, 1
        %p1037 = scmp.lt.s32.totalorder %s23, 0
        %s1038 = scalar_select %p1037, %s23, 0
        %s1039 = smul.addr %s1036, 8
        %s1040 = sadd.s32 %s1038, %s1039
        %s1041 = smul.addr %s1040, 2
        %s1042 = scalar_lea.vmem %s2, %s1041
      $region48: #{unet_block_forward.4} parent=43 // pred_fallthru
        _
      // Predicated region
      $region49: #{unet_block_forward.4} parent=43 // pred_check
        %p1043 = pneg %p131
      $region50: #{unet_block_forward.4} parent=43 // pred_check_branch
        %1045 = sbr.rel (%p1043) target = $region52
      $region51: #{unet_block_forward.4} parent=43 // pred_region
        %p1046 = scmp.lt.s32.totalorder %s23, 0
        %s1047 = scalar_select %p1046, %s23, 0
        %p1048 = scmp.lt.s32.totalorder %s22, 1
        %s1049 = scalar_select %p1048, %s22, 1
        %s1050 = smul.addr %s1047, 2
        %s1051 = sadd.s32 %s1049, %s1050
        %s1052 = smul.addr %s1051, 4
        %s1053 = scalar_lea.vmem %s3, %s1052
      $region52: #{unet_block_forward.4} parent=43 // pred_fallthru
        _
      // Predicated region
      $region53: #{unet_block_forward.4} parent=43 // pred_check
        %p1054 = pneg %p159
      $region54: #{unet_block_forward.4} parent=43 // pred_check_branch
        %1056 = sbr.rel (%p1054) target = $region56
      $region55: #{unet_block_forward.4} parent=43 // pred_region
        %p1057 = scmp.lt.s32.totalorder %s23, 0
        %s1058 = scalar_select %p1057, %s23, 0
        %p1059 = scmp.lt.s32.totalorder %s22, 1
        %s1060 = scalar_select %p1059, %s22, 1
        %s1061 = smul.addr %s1058, 2
        %s1062 = sadd.s32 %s1060, %s1061
        %s1063 = smul.addr %s1062, 4
        %s1064 = scalar_lea.vmem %s4, %s1063
      $region56: #{unet_block_forward.4} parent=43 // pred_fallthru
        _
    $region44: #{unet_block_forward.4} parent=5 // pred_fallthru
      _
  $region6: #{unet_block_forward.4} parent=0 // loop_footer
    %s15 = sadd.s32 1, %s11
  $region7: #{unet_block_forward.4} parent=0 // loop_footer_branch
    %10 = sbr.rel target = $region3
  $region8: #{unet_block_forward.4} parent=0 // loop_exit
    _

</llo_original>
